<compile_context>
chip_gen: v5e
topology: v5e:2x2
jax: 0.10.0
libtpu: 0.0.40
codegen_flags: <defaults>
</compile_context>

<pallas_src>
import functools

import jax
import jax.numpy as jnp
import numpy as np
from jax.experimental import pallas as pl
from jax.experimental.pallas import tpu as pltpu


def _se_bottleneck_kernel(has_projection, conv2_accum,
                          xs_ref,
                          w1_ref, b1_ref,
                          w2_ref, b2_ref,
                          w3_ref, b3_ref,
                          fc1w_ref, fc1b_ref,
                          fc2w_ref, fc2b_ref,
                          out_ref, hpad_ref):
    _, Ho, Wo, Cin = xs_ref.shape
    Cmid = w3_ref.shape[0]
    Cout = w3_ref.shape[1]
    P = Ho * Wo

    x2d = xs_ref[...].reshape(P, Cin)                                  # bf16, one sample

    # --- conv1 (1x1; stride folded by the wrapper) [+ fused projection shortcut] ------
    # BN scales are already folded into the weights; only the bias add remains here.
    h = jnp.dot(x2d, w1_ref[...], preferred_element_type=jnp.float32) + b1_ref[...]
    if has_projection:
        h1 = jnp.maximum(h[:, :Cmid], 0.0)                             # conv1+bn1+relu
        sc = h[:, Cmid:]                                               # proj shortcut+bn
    else:
        h1 = jnp.maximum(h, 0.0)
        sc = x2d.astype(jnp.float32)                                   # identity (Cin==Cout)

    # --- conv2 (3x3, stride 1, pad 1) + bn2 + relu ------------------------------------
    # h1 is written (in bf16) into the interior of the padded scratch; only the 1-pixel
    # halo is zeroed.
    hpad_ref[1:Ho + 1, 1:Wo + 1, :] = h1.astype(jnp.bfloat16).reshape(Ho, Wo, Cmid)
    zrow = jnp.zeros((1, Wo + 2, Cmid), jnp.bfloat16)
    zcol = jnp.zeros((Ho + 2, 1, Cmid), jnp.bfloat16)
    hpad_ref[0:1, :, :] = zrow
    hpad_ref[Ho + 1:Ho + 2, :, :] = zrow
    hpad_ref[:, 0:1, :] = zcol
    hpad_ref[:, Wo + 1:Wo + 2, :] = zcol

    if conv2_accum:
        # v5e path: 9 accumulating K=Cmid MXU dots, no im2col buffer materialized.
        h2 = None
        for t in range(9):
            dy, dx = t // 3, t % 3
            tap = hpad_ref[dy:dy + Ho, dx:dx + Wo, :].reshape(P, Cmid)
            part = jnp.dot(tap, w2_ref[t * Cmid:(t + 1) * Cmid, :],
                           preferred_element_type=jnp.float32)
            h2 = part if h2 is None else h2 + part
    else:
        # v6e/v7x path: one big-K matmul; patches are built directly in bf16.
        taps = [hpad_ref[dy:dy + Ho, dx:dx + Wo, :].reshape(P, Cmid)
                for dy in range(3) for dx in range(3)]
        patches = jnp.concatenate(taps, axis=-1)                       # (P, 9*Cmid) bf16
        h2 = jnp.dot(patches, w2_ref[...], preferred_element_type=jnp.float32)
    h2 = jnp.maximum(h2 + b2_ref[...], 0.0)                            # (P, Cmid) f32

    # --- conv3 (1x1) + bn3 (no relu yet) ----------------------------------------------
    h3 = jnp.dot(h2.astype(jnp.bfloat16), w3_ref[...],
                 preferred_element_type=jnp.float32) + b3_ref[...]     # (P, Cout) f32

    # --- SE: per-sample global average pool + 2 tiny FCs + sigmoid gate (f32) ---------
    pooled = jnp.mean(h3, axis=0, keepdims=True)                       # (1, Cout)
    g = jnp.dot(pooled, fc1w_ref[...], preferred_element_type=jnp.float32) + fc1b_ref[...]
    g = jnp.maximum(g, 0.0)
    g = jnp.dot(g, fc2w_ref[...], preferred_element_type=jnp.float32) + fc2b_ref[...]
    g = 1.0 / (1.0 + jnp.exp(-g))                                      # (1, Cout)

    out = jnp.maximum(g * h3 + sc, 0.0)                                # (P, Cout) f32
    out_ref[...] = out.reshape(1, Ho, Wo, Cout)


def _resident_spec(shape):
    nd = len(shape)
    return pl.BlockSpec(shape, lambda n, _nd=nd: (0,) * _nd)


def _device_kind():
    try:
        return jax.devices()[0].device_kind.lower()
    except Exception:
        return ""


def _default_conv2_accum():
    kind = _device_kind()
    return ("v5e" in kind) or ("v5 lite" in kind) or ("v5lite" in kind)


def _vmem_limit_bytes():
    cap = None
    try:
        cap = getattr(pltpu.get_tpu_info(), "vmem_capacity_bytes", None)
    except Exception:
        cap = None
    if not cap:
        # v7x has 64 MiB VMEM per TC; v5e/v6e have 128 MiB.
        cap = (64 if "v7" in _device_kind() else 128) * 1024 * 1024
    return int(cap) * 7 // 8          # leave headroom below physical VMEM


def se_bottleneck_forward(x_nchw, params, reduce, *, conv2_accum=None):
    """x_nchw: (N, Cin, H, W) float32 -> (N, Cout, Ho, Wo) float32."""
    stride = 2 if reduce else 1
    N, Cin, H, W = x_nchw.shape
    Cmid = params["w1"].shape[1]
    Cout = params["w3"].shape[1]
    has_projection = bool(reduce) or (Cin != Cout)
    assert has_projection == ("wsc" in params), (
        "params inconsistent with (reduce, in_channels, out_channels): projection "
        "shortcut %s but 'wsc' %s" % ("required" if has_projection else "not required",
                                      "missing" if has_projection else "provided"))

    if conv2_accum is None:
        conv2_accum = _default_conv2_accum()

    # Glue: NCHW -> NHWC (channels-last so every conv is an MXU matmul), fold the
    # 1x1-conv stride by subsampling rows/cols, and DMA the activations in bf16.
    # TODO(synk): chain blocks in NHWC so this transpose (an extra HBM round trip per
    # block) happens once per network instead of once per block.
    xs = jnp.transpose(x_nchw[:, :, ::stride, ::stride], (0, 2, 3, 1)).astype(jnp.bfloat16)
    Ho, Wo = xs.shape[1], xs.shape[2]

    f32, bf16 = jnp.float32, jnp.bfloat16

    # Fold BN scales into the conv weights (in f32, before the bf16 cast).
    w1s = params["w1"].astype(f32) * params["bn1_scale"]                  # (Cin, Cmid)
    w2s = params["w2"].astype(f32).reshape(9 * Cmid, Cmid) * params["bn2_scale"]
    w3s = params["w3"].astype(f32) * params["bn3_scale"]                  # (Cmid, Cout)

    if has_projection:
        wscs = params["wsc"].astype(f32) * params["bnsc_scale"]           # (Cin, Cout)
        w1cat = jnp.concatenate([w1s, wscs], axis=1).astype(bf16)         # (Cin, Cmid+Cout)
        b1cat = jnp.concatenate([params["bn1_bias"], params["bnsc_bias"]], axis=1)
    else:
        w1cat = w1s.astype(bf16)
        b1cat = params["bn1_bias"]

    args = [xs,
            w1cat, b1cat.astype(f32),
            w2s.astype(bf16), params["bn2_bias"].astype(f32),
            w3s.astype(bf16), params["bn3_bias"].astype(f32),
            params["fc1_w"].astype(f32), params["fc1_b"].astype(f32),
            params["fc2_w"].astype(f32), params["fc2_b"].astype(f32)]

    in_specs = [pl.BlockSpec((1, Ho, Wo, Cin), lambda n: (n, 0, 0, 0))]
    in_specs += [_resident_spec(a.shape) for a in args[1:]]   # weights stay resident

    out_nhwc = pl.pallas_call(
        functools.partial(_se_bottleneck_kernel, has_projection, conv2_accum),
        grid=(N,),
        in_specs=in_specs,
        out_specs=pl.BlockSpec((1, Ho, Wo, Cout), lambda n: (n, 0, 0, 0)),
        out_shape=jax.ShapeDtypeStruct((N, Ho, Wo, Cout), jnp.float32),
        scratch_shapes=[pltpu.VMEM((Ho + 2, Wo + 2, Cmid), jnp.bfloat16)],
        compiler_params=pltpu.CompilerParams(
            # megacore over samples on v7x; tiny batches keep one pipelined grid per core
            dimension_semantics=("parallel",) if N >= 4 else ("arbitrary",),
            vmem_limit_bytes=_vmem_limit_bytes()),
    )(*args)

    return jnp.transpose(out_nhwc, (0, 3, 1, 2))              # back to NCHW


def init_params(key, in_channels, mid_channels, out_channels, reduce, r=16, eps=1e-5):
    ks = jax.random.split(key, 12)

    def bn(k, c):
        k1, k2, k3, k4 = jax.random.split(k, 4)
        gamma = 1.0 + 0.1 * jax.random.normal(k1, (c,), jnp.float32)
        beta = 0.1 * jax.random.normal(k2, (c,), jnp.float32)
        mean = 0.1 * jax.random.normal(k3, (c,), jnp.float32)
        var = jax.random.uniform(k4, (c,), jnp.float32, 0.5, 1.5)
        scale = gamma / jnp.sqrt(var + eps)
        bias = beta - mean * scale
        return scale.reshape(1, c), bias.reshape(1, c)

    cr = out_channels // r
    p = {}
    p["w1"] = 0.1 * jax.random.normal(ks[0], (in_channels, mid_channels), jnp.float32)
    p["bn1_scale"], p["bn1_bias"] = bn(ks[1], mid_channels)
    p["w2"] = 0.1 * jax.random.normal(ks[2], (3, 3, mid_channels, mid_channels), jnp.float32)
    p["bn2_scale"], p["bn2_bias"] = bn(ks[3], mid_channels)
    p["w3"] = 0.1 * jax.random.normal(ks[4], (mid_channels, out_channels), jnp.float32)
    p["bn3_scale"], p["bn3_bias"] = bn(ks[5], out_channels)

    if reduce or (in_channels != out_channels):     # projection shortcut only when needed
        p["wsc"] = 0.1 * jax.random.normal(ks[6], (in_channels, out_channels), jnp.float32)
        p["bnsc_scale"], p["bnsc_bias"] = bn(ks[7], out_channels)

    p["fc1_w"] = 0.1 * jax.random.normal(ks[8], (out_channels, cr), jnp.float32)
    p["fc1_b"] = 0.1 * jax.random.normal(ks[9], (1, cr), jnp.float32)
    p["fc2_w"] = 0.1 * jax.random.normal(ks[10], (cr, out_channels), jnp.float32)
    p["fc2_b"] = 0.1 * jax.random.normal(ks[11], (1, out_channels), jnp.float32)
    return p


def reference_forward(x, p, reduce):
    """Pure-JAX f32 NCHW reference mirroring the PyTorch module (inference-mode BN)."""
    stride = 2 if reduce else 1

    def conv2d(x, w_oihw, s, padding):
        return jax.lax.conv_general_dilated(
            x, w_oihw, window_strides=(s, s), padding=padding,
            dimension_numbers=("NCHW", "OIHW", "NCHW"))

    def bn(x, scale, bias):
        return x * scale[0][None, :, None, None] + bias[0][None, :, None, None]

    w1 = jnp.transpose(p["w1"])[:, :, None, None]
    w2 = jnp.transpose(p["w2"], (3, 2, 0, 1))
    w3 = jnp.transpose(p["w3"])[:, :, None, None]

    out = jax.nn.relu(bn(conv2d(x, w1, stride, "VALID"), p["bn1_scale"], p["bn1_bias"]))
    out = jax.nn.relu(bn(conv2d(out, w2, 1, [(1, 1), (1, 1)]), p["bn2_scale"], p["bn2_bias"]))
    out = bn(conv2d(out, w3, 1, "VALID"), p["bn3_scale"], p["bn3_bias"])

    n, c = out.shape[:2]
    pooled = jnp.mean(out, axis=(2, 3))
    g = jax.nn.relu(pooled @ p["fc1_w"] + p["fc1_b"])
    g = jax.nn.sigmoid(g @ p["fc2_w"] + p["fc2_b"])
    se = g.reshape(n, c, 1, 1) * out

    if "wsc" in p:
        wsc = jnp.transpose(p["wsc"])[:, :, None, None]
        sc = bn(conv2d(x, wsc, stride, "VALID"), p["bnsc_scale"], p["bnsc_bias"])
    else:
        sc = x
    return jax.nn.relu(se + sc)


if __name__ == "__main__":
    key = jax.random.PRNGKey(0)
    k1, k2, k3, k4 = jax.random.split(key, 4)

    default_accum = _default_conv2_accum()

    # Test 1: projection shortcut (reduce=True), chip-default conv2 path.
    N, H, W = 2, 16, 16
    in_c, mid_c, out_c = 64, 128, 256
    x = jax.random.normal(k1, (N, in_c, H, W), jnp.float32)
    params = init_params(k2, in_c, mid_c, out_c, reduce=True)
    out = jax.block_until_ready(se_bottleneck_forward(x, params, True))
    ref = reference_forward(x, params, True)
    assert out.shape == (N, out_c, H // 2, W // 2), out.shape
    # kernel matmuls + activations run in bf16 (f32 accumulate); compare loosely vs f32.
    np.testing.assert_allclose(np.asarray(out), np.asarray(ref), atol=5e-2, rtol=5e-2)

    # Test 2: identity shortcut (reduce=False, in == out) and the *other* conv2 path,
    # so both the big-K im2col matmul and the 9-dot accumulation path are exercised.
    in_c2, mid_c2, out_c2 = 256, 128, 256
    x2 = jax.random.normal(k3, (N, in_c2, 8, 8), jnp.float32)
    params2 = init_params(k4, in_c2, mid_c2, out_c2, reduce=False)
    out2 = jax.block_until_ready(
        se_bottleneck_forward(x2, params2, False, conv2_accum=not default_accum))
    ref2 = reference_forward(x2, params2, False)
    assert out2.shape == (N, out_c2, 8, 8), out2.shape
    np.testing.assert_allclose(np.asarray(out2), np.asarray(ref2), atol=5e-2, rtol=5e-2)

    print("KERNEL_OK")
</pallas_src>

<mosaic_0001>
module attributes {stable_mosaic.version = 11 : i64} {
  func.func @_se_bottleneck_kernel(%arg0: i32, %arg1: memref<1x8x8x64xbf16, #tpu.memory_space<vmem>>, %arg2: memref<64x384xbf16, #tpu.memory_space<vmem>>, %arg3: memref<1x384xf32, #tpu.memory_space<vmem>>, %arg4: memref<1152x128xbf16, #tpu.memory_space<vmem>>, %arg5: memref<1x128xf32, #tpu.memory_space<vmem>>, %arg6: memref<128x256xbf16, #tpu.memory_space<vmem>>, %arg7: memref<1x256xf32, #tpu.memory_space<vmem>>, %arg8: memref<256x16xf32, #tpu.memory_space<vmem>>, %arg9: memref<1x16xf32, #tpu.memory_space<vmem>>, %arg10: memref<16x256xf32, #tpu.memory_space<vmem>>, %arg11: memref<1x256xf32, #tpu.memory_space<vmem>>, %arg12: memref<1x8x8x256xf32, #tpu.memory_space<vmem>>, %arg13: memref<10x10x128xbf16, #tpu.memory_space<vmem>>) attributes {dimension_semantics = [#tpu.dimension_semantics<arbitrary>], iteration_bounds = array<i64: 2>, scalar_prefetch = 0 : i64, scratch_operands = 1 : i64, tpu.core_type = #tpu.core_type<tc>, window_params = [{transform_indices = @transform_0, window_bounds = array<i64: 1, 8, 8, 64>}, {pipeline_mode = #tpu.pipeline_mode<synchronous>, transform_indices = @transform_1, window_bounds = array<i64: 64, 384>}, {pipeline_mode = #tpu.pipeline_mode<synchronous>, transform_indices = @transform_2, window_bounds = array<i64: 1, 384>}, {pipeline_mode = #tpu.pipeline_mode<synchronous>, transform_indices = @transform_3, window_bounds = array<i64: 1152, 128>}, {pipeline_mode = #tpu.pipeline_mode<synchronous>, transform_indices = @transform_4, window_bounds = array<i64: 1, 128>}, {pipeline_mode = #tpu.pipeline_mode<synchronous>, transform_indices = @transform_5, window_bounds = array<i64: 128, 256>}, {pipeline_mode = #tpu.pipeline_mode<synchronous>, transform_indices = @transform_6, window_bounds = array<i64: 1, 256>}, {pipeline_mode = #tpu.pipeline_mode<synchronous>, transform_indices = @transform_7, window_bounds = array<i64: 256, 16>}, {pipeline_mode = #tpu.pipeline_mode<synchronous>, transform_indices = @transform_8, window_bounds = array<i64: 1, 16>}, {pipeline_mode = #tpu.pipeline_mode<synchronous>, transform_indices = @transform_9, window_bounds = array<i64: 16, 256>}, {pipeline_mode = #tpu.pipeline_mode<synchronous>, transform_indices = @transform_10, window_bounds = array<i64: 1, 256>}, {transform_indices = @transform_11, window_bounds = array<i64: 1, 8, 8, 256>}]} {
    %c0 = arith.constant 0 : index
    %c0_0 = arith.constant 0 : index
    %c0_1 = arith.constant 0 : index
    %c0_2 = arith.constant 0 : index
    %0 = vector.load %arg1[%c0, %c0_0, %c0_1, %c0_2] : memref<1x8x8x64xbf16, #tpu.memory_space<vmem>>, vector<1x8x8x64xbf16>
    %1 = vector.shape_cast %0 : vector<1x8x8x64xbf16> to vector<64x64xbf16>
    %c0_3 = arith.constant 0 : index
    %c0_4 = arith.constant 0 : index
    %2 = vector.load %arg2[%c0_3, %c0_4] : memref<64x384xbf16, #tpu.memory_space<vmem>>, vector<64x384xbf16>
    %cst = arith.constant dense<0.000000e+00> : vector<64x384xf32>
    %3 = tpu.matmul %1, %2, %cst {dimension_numbers = #tpu.dot_dimension_numbers<[1], [0], [0], [1], [0, 0, 1, 1], [], []>} : vector<64x64xbf16>, vector<64x384xbf16>, vector<64x384xf32> -> vector<64x384xf32>
    %c0_5 = arith.constant 0 : index
    %c0_6 = arith.constant 0 : index
    %4 = vector.load %arg3[%c0_5, %c0_6] : memref<1x384xf32, #tpu.memory_space<vmem>>, vector<1x384xf32>
    %5 = vector.broadcast %4 : vector<1x384xf32> to vector<64x384xf32>
    %6 = arith.addf %3, %5 : vector<64x384xf32>
    %7 = vector.extract_strided_slice %6 {offsets = [0, 0], sizes = [64, 128], strides = [1, 1]} : vector<64x384xf32> to vector<64x128xf32>
    %cst_7 = arith.constant 0.000000e+00 : f32
    %8 = vector.broadcast %cst_7 : f32 to vector<64x128xf32>
    %9 = arith.maximumf %7, %8 : vector<64x128xf32>
    %10 = vector.extract_strided_slice %6 {offsets = [0, 128], sizes = [64, 256], strides = [1, 1]} : vector<64x384xf32> to vector<64x256xf32>
    %11 = arith.truncf %9 : vector<64x128xf32> to vector<64x128xbf16>
    %12 = vector.shape_cast %11 : vector<64x128xbf16> to vector<8x8x128xbf16>
    %c1 = arith.constant 1 : index
    %c1_8 = arith.constant 1 : index
    %c0_9 = arith.constant 0 : index
    %13 = vector.load %arg13[%c1, %c1_8, %c0_9] : memref<10x10x128xbf16, #tpu.memory_space<vmem>>, vector<8x8x128xbf16>
    tpu.vector_store %arg13[%c1, %c1_8, %c0_9], %12 {strides = array<i32>} : memref<10x10x128xbf16, #tpu.memory_space<vmem>>, vector<8x8x128xbf16>,
    %cst_10 = arith.constant 0.000000e+00 : bf16
    %14 = vector.broadcast %cst_10 : bf16 to vector<1x10x128xbf16>
    %cst_11 = arith.constant 0.000000e+00 : bf16
    %15 = vector.broadcast %cst_11 : bf16 to vector<10x1x128xbf16>
    %c0_12 = arith.constant 0 : index
    %c0_13 = arith.constant 0 : index
    %c0_14 = arith.constant 0 : index
    %16 = vector.load %arg13[%c0_12, %c0_13, %c0_14] : memref<10x10x128xbf16, #tpu.memory_space<vmem>>, vector<1x10x128xbf16>
    tpu.vector_store %arg13[%c0_12, %c0_13, %c0_14], %14 {strides = array<i32>} : memref<10x10x128xbf16, #tpu.memory_space<vmem>>, vector<1x10x128xbf16>,
    %c9 = arith.constant 9 : index
    %c0_15 = arith.constant 0 : index
    %c0_16 = arith.constant 0 : index
    %17 = vector.load %arg13[%c9, %c0_15, %c0_16] : memref<10x10x128xbf16, #tpu.memory_space<vmem>>, vector<1x10x128xbf16>
    tpu.vector_store %arg13[%c9, %c0_15, %c0_16], %14 {strides = array<i32>} : memref<10x10x128xbf16, #tpu.memory_space<vmem>>, vector<1x10x128xbf16>,
    %c0_17 = arith.constant 0 : index
    %c0_18 = arith.constant 0 : index
    %c0_19 = arith.constant 0 : index
    %18 = vector.load %arg13[%c0_17, %c0_18, %c0_19] : memref<10x10x128xbf16, #tpu.memory_space<vmem>>, vector<10x1x128xbf16>
    tpu.vector_store %arg13[%c0_17, %c0_18, %c0_19], %15 {strides = array<i32>} : memref<10x10x128xbf16, #tpu.memory_space<vmem>>, vector<10x1x128xbf16>,
    %c0_20 = arith.constant 0 : index
    %c9_21 = arith.constant 9 : index
    %c0_22 = arith.constant 0 : index
    %19 = vector.load %arg13[%c0_20, %c9_21, %c0_22] : memref<10x10x128xbf16, #tpu.memory_space<vmem>>, vector<10x1x128xbf16>
    tpu.vector_store %arg13[%c0_20, %c9_21, %c0_22], %15 {strides = array<i32>} : memref<10x10x128xbf16, #tpu.memory_space<vmem>>, vector<10x1x128xbf16>,
    %c0_23 = arith.constant 0 : index
    %c0_24 = arith.constant 0 : index
    %c0_25 = arith.constant 0 : index
    %20 = vector.load %arg13[%c0_23, %c0_24, %c0_25] : memref<10x10x128xbf16, #tpu.memory_space<vmem>>, vector<8x8x128xbf16>
    %21 = vector.shape_cast %20 : vector<8x8x128xbf16> to vector<64x128xbf16>
    %c0_26 = arith.constant 0 : index
    %c1_27 = arith.constant 1 : index
    %c0_28 = arith.constant 0 : index
    %22 = vector.load %arg13[%c0_26, %c1_27, %c0_28] : memref<10x10x128xbf16, #tpu.memory_space<vmem>>, vector<8x8x128xbf16>
    %23 = vector.shape_cast %22 : vector<8x8x128xbf16> to vector<64x128xbf16>
    %c0_29 = arith.constant 0 : index
    %c2 = arith.constant 2 : index
    %c0_30 = arith.constant 0 : index
    %24 = vector.load %arg13[%c0_29, %c2, %c0_30] : memref<10x10x128xbf16, #tpu.memory_space<vmem>>, vector<8x8x128xbf16>
    %25 = vector.shape_cast %24 : vector<8x8x128xbf16> to vector<64x128xbf16>
    %c1_31 = arith.constant 1 : index
    %c0_32 = arith.constant 0 : index
    %c0_33 = arith.constant 0 : index
    %26 = vector.load %arg13[%c1_31, %c0_32, %c0_33] : memref<10x10x128xbf16, #tpu.memory_space<vmem>>, vector<8x8x128xbf16>
    %27 = vector.shape_cast %26 : vector<8x8x128xbf16> to vector<64x128xbf16>
    %c1_34 = arith.constant 1 : index
    %c1_35 = arith.constant 1 : index
    %c0_36 = arith.constant 0 : index
    %28 = vector.load %arg13[%c1_34, %c1_35, %c0_36] : memref<10x10x128xbf16, #tpu.memory_space<vmem>>, vector<8x8x128xbf16>
    %29 = vector.shape_cast %28 : vector<8x8x128xbf16> to vector<64x128xbf16>
    %c1_37 = arith.constant 1 : index
    %c2_38 = arith.constant 2 : index
    %c0_39 = arith.constant 0 : index
    %30 = vector.load %arg13[%c1_37, %c2_38, %c0_39] : memref<10x10x128xbf16, #tpu.memory_space<vmem>>, vector<8x8x128xbf16>
    %31 = vector.shape_cast %30 : vector<8x8x128xbf16> to vector<64x128xbf16>
    %c2_40 = arith.constant 2 : index
    %c0_41 = arith.constant 0 : index
    %c0_42 = arith.constant 0 : index
    %32 = vector.load %arg13[%c2_40, %c0_41, %c0_42] : memref<10x10x128xbf16, #tpu.memory_space<vmem>>, vector<8x8x128xbf16>
    %33 = vector.shape_cast %32 : vector<8x8x128xbf16> to vector<64x128xbf16>
    %c2_43 = arith.constant 2 : index
    %c1_44 = arith.constant 1 : index
    %c0_45 = arith.constant 0 : index
    %34 = vector.load %arg13[%c2_43, %c1_44, %c0_45] : memref<10x10x128xbf16, #tpu.memory_space<vmem>>, vector<8x8x128xbf16>
    %35 = vector.shape_cast %34 : vector<8x8x128xbf16> to vector<64x128xbf16>
    %c2_46 = arith.constant 2 : index
    %c2_47 = arith.constant 2 : index
    %c0_48 = arith.constant 0 : index
    %36 = vector.load %arg13[%c2_46, %c2_47, %c0_48] : memref<10x10x128xbf16, #tpu.memory_space<vmem>>, vector<8x8x128xbf16>
    %37 = vector.shape_cast %36 : vector<8x8x128xbf16> to vector<64x128xbf16>
    %38 = tpu.concatenate %21, %23, %25, %27, %29, %31, %33, %35, %37 in 1 : vector<64x128xbf16>, vector<64x128xbf16>, vector<64x128xbf16>, vector<64x128xbf16>, vector<64x128xbf16>, vector<64x128xbf16>, vector<64x128xbf16>, vector<64x128xbf16>, vector<64x128xbf16> -> vector<64x1152xbf16>
    %c0_49 = arith.constant 0 : index
    %c0_50 = arith.constant 0 : index
    %39 = vector.load %arg4[%c0_49, %c0_50] : memref<1152x128xbf16, #tpu.memory_space<vmem>>, vector<1152x128xbf16>
    %cst_51 = arith.constant dense<0.000000e+00> : vector<64x128xf32>
    %40 = tpu.matmul %38, %39, %cst_51 {dimension_numbers = #tpu.dot_dimension_numbers<[1], [0], [0], [1], [0, 0, 1, 1], [], []>} : vector<64x1152xbf16>, vector<1152x128xbf16>, vector<64x128xf32> -> vector<64x128xf32>
    %c0_52 = arith.constant 0 : index
    %c0_53 = arith.constant 0 : index
    %41 = vector.load %arg5[%c0_52, %c0_53] : memref<1x128xf32, #tpu.memory_space<vmem>>, vector<1x128xf32>
    %42 = vector.broadcast %41 : vector<1x128xf32> to vector<64x128xf32>
    %43 = arith.addf %40, %42 : vector<64x128xf32>
    %cst_54 = arith.constant 0.000000e+00 : f32
    %44 = vector.broadcast %cst_54 : f32 to vector<64x128xf32>
    %45 = arith.maximumf %43, %44 : vector<64x128xf32>
    %46 = arith.truncf %45 : vector<64x128xf32> to vector<64x128xbf16>
    %c0_55 = arith.constant 0 : index
    %c0_56 = arith.constant 0 : index
    %47 = vector.load %arg6[%c0_55, %c0_56] : memref<128x256xbf16, #tpu.memory_space<vmem>>, vector<128x256xbf16>
    %cst_57 = arith.constant dense<0.000000e+00> : vector<64x256xf32>
    %48 = tpu.matmul %46, %47, %cst_57 {dimension_numbers = #tpu.dot_dimension_numbers<[1], [0], [0], [1], [0, 0, 1, 1], [], []>} : vector<64x128xbf16>, vector<128x256xbf16>, vector<64x256xf32> -> vector<64x256xf32>
    %c0_58 = arith.constant 0 : index
    %c0_59 = arith.constant 0 : index
    %49 = vector.load %arg7[%c0_58, %c0_59] : memref<1x256xf32, #tpu.memory_space<vmem>>, vector<1x256xf32>
    %50 = vector.broadcast %49 : vector<1x256xf32> to vector<64x256xf32>
    %51 = arith.addf %48, %50 : vector<64x256xf32>
    %cst_60 = arith.constant dense<0.000000e+00> : vector<256xf32>
    %52 = vector.multi_reduction <add>, %51, %cst_60 [0] : vector<64x256xf32> to vector<256xf32>
    %53 = vector.shape_cast %52 : vector<256xf32> to vector<1x256xf32>
    %cst_61 = arith.constant 6.400000e+01 : f32
    %54 = vector.broadcast %cst_61 : f32 to vector<1x256xf32>
    %55 = arith.divf %53, %54 : vector<1x256xf32>
    %c0_62 = arith.constant 0 : index
    %c0_63 = arith.constant 0 : index
    %56 = vector.load %arg8[%c0_62, %c0_63] : memref<256x16xf32, #tpu.memory_space<vmem>>, vector<256x16xf32>
    %cst_64 = arith.constant dense<0.000000e+00> : vector<1x16xf32>
    %57 = tpu.matmul %55, %56, %cst_64 {dimension_numbers = #tpu.dot_dimension_numbers<[1], [0], [0], [1], [0, 0, 1, 1], [], []>} : vector<1x256xf32>, vector<256x16xf32>, vector<1x16xf32> -> vector<1x16xf32>
    %c0_65 = arith.constant 0 : index
    %c0_66 = arith.constant 0 : index
    %58 = vector.load %arg9[%c0_65, %c0_66] : memref<1x16xf32, #tpu.memory_space<vmem>>, vector<1x16xf32>
    %59 = arith.addf %57, %58 : vector<1x16xf32>
    %cst_67 = arith.constant 0.000000e+00 : f32
    %60 = vector.broadcast %cst_67 : f32 to vector<1x16xf32>
    %61 = arith.maximumf %59, %60 : vector<1x16xf32>
    %c0_68 = arith.constant 0 : index
    %c0_69 = arith.constant 0 : index
    %62 = vector.load %arg10[%c0_68, %c0_69] : memref<16x256xf32, #tpu.memory_space<vmem>>, vector<16x256xf32>
    %cst_70 = arith.constant dense<0.000000e+00> : vector<1x256xf32>
    %63 = tpu.matmul %61, %62, %cst_70 {dimension_numbers = #tpu.dot_dimension_numbers<[1], [0], [0], [1], [0, 0, 1, 1], [], []>} : vector<1x16xf32>, vector<16x256xf32>, vector<1x256xf32> -> vector<1x256xf32>
    %c0_71 = arith.constant 0 : index
    %c0_72 = arith.constant 0 : index
    %64 = vector.load %arg11[%c0_71, %c0_72] : memref<1x256xf32, #tpu.memory_space<vmem>>, vector<1x256xf32>
    %65 = arith.addf %63, %64 : vector<1x256xf32>
    %cst_73 = arith.constant 0.000000e+00 : f32
    %66 = vector.broadcast %cst_73 : f32 to vector<1x256xf32>
    %67 = arith.subf %66, %65 : vector<1x256xf32>
    %68 = math.exp %67 : vector<1x256xf32>
    %cst_74 = arith.constant 1.000000e+00 : f32
    %69 = vector.broadcast %cst_74 : f32 to vector<1x256xf32>
    %70 = arith.addf %69, %68 : vector<1x256xf32>
    %cst_75 = arith.constant 1.000000e+00 : f32
    %71 = vector.broadcast %cst_75 : f32 to vector<1x256xf32>
    %72 = arith.divf %71, %70 : vector<1x256xf32>
    %73 = vector.broadcast %72 : vector<1x256xf32> to vector<64x256xf32>
    %74 = arith.mulf %73, %51 : vector<64x256xf32>
    %75 = arith.addf %74, %10 : vector<64x256xf32>
    %cst_76 = arith.constant 0.000000e+00 : f32
    %76 = vector.broadcast %cst_76 : f32 to vector<64x256xf32>
    %77 = arith.maximumf %75, %76 : vector<64x256xf32>
    %78 = vector.shape_cast %77 : vector<64x256xf32> to vector<1x8x8x256xf32>
    %c0_77 = arith.constant 0 : index
    %c0_78 = arith.constant 0 : index
    %c0_79 = arith.constant 0 : index
    %c0_80 = arith.constant 0 : index
    %79 = vector.load %arg12[%c0_77, %c0_78, %c0_79, %c0_80] : memref<1x8x8x256xf32, #tpu.memory_space<vmem>>, vector<1x8x8x256xf32>
    tpu.vector_store %arg12[%c0_77, %c0_78, %c0_79, %c0_80], %78 {strides = array<i32>} : memref<1x8x8x256xf32, #tpu.memory_space<vmem>>, vector<1x8x8x256xf32>,
    return
  }
  func.func @transform_0(%arg0: i32) -> (i32, i32, i32, i32) {
    %c0_i32 = arith.constant 0 : i32
    %c0_i32_0 = arith.constant 0 : i32
    %c0_i32_1 = arith.constant 0 : i32
    %c0_i32_2 = arith.constant 0 : i32
    return %arg0, %c0_i32, %c0_i32_0, %c0_i32_1 : i32, i32, i32, i32
  }
  func.func @transform_1(%arg0: i32) -> (i32, i32) {
    %c0_i32 = arith.constant 0 : i32
    %c0_i32_0 = arith.constant 0 : i32
    %c0_i32_1 = arith.constant 0 : i32
    return %c0_i32, %c0_i32_0 : i32, i32
  }
  func.func @transform_2(%arg0: i32) -> (i32, i32) {
    %c0_i32 = arith.constant 0 : i32
    %c0_i32_0 = arith.constant 0 : i32
    %c0_i32_1 = arith.constant 0 : i32
    return %c0_i32, %c0_i32_0 : i32, i32
  }
  func.func @transform_3(%arg0: i32) -> (i32, i32) {
    %c0_i32 = arith.constant 0 : i32
    %c0_i32_0 = arith.constant 0 : i32
    %c0_i32_1 = arith.constant 0 : i32
    return %c0_i32, %c0_i32_0 : i32, i32
  }
  func.func @transform_4(%arg0: i32) -> (i32, i32) {
    %c0_i32 = arith.constant 0 : i32
    %c0_i32_0 = arith.constant 0 : i32
    %c0_i32_1 = arith.constant 0 : i32
    return %c0_i32, %c0_i32_0 : i32, i32
  }
  func.func @transform_5(%arg0: i32) -> (i32, i32) {
    %c0_i32 = arith.constant 0 : i32
    %c0_i32_0 = arith.constant 0 : i32
    %c0_i32_1 = arith.constant 0 : i32
    return %c0_i32, %c0_i32_0 : i32, i32
  }
  func.func @transform_6(%arg0: i32) -> (i32, i32) {
    %c0_i32 = arith.constant 0 : i32
    %c0_i32_0 = arith.constant 0 : i32
    %c0_i32_1 = arith.constant 0 : i32
    return %c0_i32, %c0_i32_0 : i32, i32
  }
  func.func @transform_7(%arg0: i32) -> (i32, i32) {
    %c0_i32 = arith.constant 0 : i32
    %c0_i32_0 = arith.constant 0 : i32
    %c0_i32_1 = arith.constant 0 : i32
    return %c0_i32, %c0_i32_0 : i32, i32
  }
  func.func @transform_8(%arg0: i32) -> (i32, i32) {
    %c0_i32 = arith.constant 0 : i32
    %c0_i32_0 = arith.constant 0 : i32
    %c0_i32_1 = arith.constant 0 : i32
    return %c0_i32, %c0_i32_0 : i32, i32
  }
  func.func @transform_9(%arg0: i32) -> (i32, i32) {
    %c0_i32 = arith.constant 0 : i32
    %c0_i32_0 = arith.constant 0 : i32
    %c0_i32_1 = arith.constant 0 : i32
    return %c0_i32, %c0_i32_0 : i32, i32
  }
  func.func @transform_10(%arg0: i32) -> (i32, i32) {
    %c0_i32 = arith.constant 0 : i32
    %c0_i32_0 = arith.constant 0 : i32
    %c0_i32_1 = arith.constant 0 : i32
    return %c0_i32, %c0_i32_0 : i32, i32
  }
  func.func @transform_11(%arg0: i32) -> (i32, i32, i32, i32) {
    %c0_i32 = arith.constant 0 : i32
    %c0_i32_0 = arith.constant 0 : i32
    %c0_i32_1 = arith.constant 0 : i32
    %c0_i32_2 = arith.constant 0 : i32
    return %arg0, %c0_i32, %c0_i32_0, %c0_i32_1 : i32, i32, i32, i32
  }
}

</mosaic_0001>

<llo_original>
// kernel: tpu_custom_call.1
$region0: #{tpu_custom_call.1}
  #allocation0 [shape = 'u32[]', space=smem, size = 0x4, offset = 0x4, fixed_abs, tag = 'smem constant byte address 0x4 - core index']
  #allocation1 [shape = 'u32[72,128]{1,0:T(1,128)}', space=vmem, size = 0x9000, scoped, tag = 'internal scratch']
  #allocation2 [shape = 'bf16[10,10,128]{2,1,0:T(8,128)(2,1)}', space=vmem, size = 0xa000, scoped, tag = 'scratch operand']
  %s0 = inlined_call_operand.vmem [shape: bf16[2,8,8,64], index: 0, kind: input, shape index: {}]
  %s1 = inlined_call_operand.vmem [shape: bf16[64,384], index: 1, kind: input, shape index: {}]
  %s2 = inlined_call_operand.hbm [shape: f32[1,384], index: 2, kind: input, shape index: {}]
  %s3 = inlined_call_operand.hbm [shape: bf16[1152,128], index: 3, kind: input, shape index: {}]
  %s4 = inlined_call_operand.vmem [shape: f32[1,128], index: 4, kind: input, shape index: {}]
  %s5 = inlined_call_operand.vmem [shape: bf16[128,256], index: 5, kind: input, shape index: {}]
  %s6 = inlined_call_operand.vmem [shape: f32[1,256], index: 6, kind: input, shape index: {}]
  %s7 = inlined_call_operand.vmem [shape: f32[256,16], index: 7, kind: input, shape index: {}]
  %s8 = inlined_call_operand.vmem [shape: f32[1,16], index: 8, kind: input, shape index: {}]
  %s9 = inlined_call_operand.hbm [shape: f32[16,256], index: 9, kind: input, shape index: {}]
  %s10 = inlined_call_operand.vmem [shape: f32[1,256], index: 10, kind: input, shape index: {}]
  %s11 = inlined_call_operand.hbm [shape: f32[2,8,8,256], index: 11, kind: output, shape index: {}]
  %s12 = sld [smem:[#allocation0]]
  $region89: #{tpu_custom_call.1} parent=0
    _
  %s14 = ssub.s32 1, %s12
  %s15 = scalar_select 0, %s14, %s12
  $region1: #{tpu_custom_call.1} parent=0
    #allocation3 [shape = 'u8[1536]{0}', space=vmem, size = 0x800, scoped, tag = 'input window, operand 2, single buffered']
    #allocation4 [shape = 's32[2]{0}', space=sflag, size = 0x8, scoped, tag = 'scoped memory for tpu_custom_call.1']
    #allocation5 [shape = 's32[2]{0}', space=sflag, size = 0x8, scoped, tag = 'scoped memory for tpu_custom_call.1']
    #allocation6 [shape = 'u8[294912]{0}', space=vmem, size = 0x48000, scoped, tag = 'input window, operand 3, single buffered']
    #allocation7 [shape = 's32[1]{0}', space=sflag, size = 0x4, scoped, tag = 'scoped memory for tpu_custom_call.1']
    #allocation8 [shape = 'u8[16384]{0}', space=vmem, size = 0x4000, scoped, tag = 'input window, operand 9, single buffered']
    #allocation9 [shape = 'u8[131072]{0}', space=vmem, size = 0x20000, scoped, tag = 'output window, operand 0']
    %16 = vsyncpa [#allocation4], 0
    %17 = vsyncpa [#allocation7], 0
    %18 = vsyncpa [#allocation5], 0
    %s19 = scalar_lea.sflag [#allocation5], 1
    %20 = vsyncpa %s19, 0
    loop: start=0, step=1, limit=4
    $region2: #{tpu_custom_call.1} parent=1 // loop_pre_header
      _
    $region3: #{tpu_custom_call.1} parent=1 // loop_header
      %s22 = sphi 0, %s26
      %p23 = scmp.ge.s32.totalorder %s22, 4
      %s32 = sphi 0, %s34
      %s35 = sphi 0, %s32
      %s36 = sphi 0, %s35
      %s52 = sphi 0, %s36
      %s56 = sphi 0, %s56
      %s58 = sphi 0, %s56
      %s59 = sphi 0, %s58
      %s73 = sphi 0, %s59
      %s77 = sphi 0, %s77
      %s79 = sphi 0, %s77
      %s80 = sphi 0, %s79
      %s94 = sphi 0, %s80
      %s98 = sphi 0, %s98
      %s100 = sphi 0, %s98
      %s101 = sphi 0, %s100
      %s115 = sphi 0, %s101
      %s119 = sphi 0, %s119
      %s121 = sphi 0, %s119
      %s122 = sphi 0, %s121
      %s136 = sphi 0, %s122
      %s140 = sphi 0, %s140
      %s142 = sphi 0, %s140
      %s143 = sphi 0, %s142
      %s157 = sphi 0, %s143
      %s161 = sphi 0, %s161
      %s163 = sphi 0, %s161
      %s164 = sphi 0, %s163
      %s178 = sphi 0, %s164
      %s182 = sphi 0, %s182
      %s184 = sphi 0, %s182
      %s185 = sphi 0, %s184
      %s199 = sphi 0, %s185
      %s203 = sphi 0, %s203
      %s205 = sphi 0, %s203
      %s206 = sphi 0, %s205
      %s220 = sphi 0, %s206
      %s224 = sphi 0, %s224
      %s226 = sphi 0, %s224
      %s227 = sphi 0, %s226
      %s241 = sphi 0, %s227
      %s245 = sphi 0, %s245
      %s247 = sphi 0, %s245
      %s248 = sphi 0, %s247
      %s262 = sphi 0, %s248
      %s268 = sphi 0, %s270
      %s271 = sphi 0, %s268
      %s272 = sphi 0, %s271
      %s288 = sphi 0, %s272
    $region4: #{tpu_custom_call.1} parent=1 // loop_header_branch
      %25 = sbr.rel (%p23) target = $region8
    $region5: #{tpu_custom_call.1} parent=1 // loop_body
      %s27 = ssub.s32 %s22, 1
      %s28 = ssub.s32 %s22, 2
      %s29 = sadd.s32 %s22, 1
      %s30 = ssub.s32 %s22, %s29
      %p31 = scmp.eq.s32.totalorder %s30, 0
      %s33 = sadd.s32 %s32, 1
      %s34 = scalar_select %p31, %s32, %s33
      %p37 = pneg %p31
      %p38 = scmp.eq.s32.totalorder %s22, 1
      %p39 = por %p37, %p38
      %p40 = scmp.ne.s32.totalorder %s32, %s35
      %p41 = scmp.eq.s32.totalorder %s22, 0
      %p42 = por %p40, %p41
      %p43 = scmp.ne.s32.totalorder %s32, %s35
      %p44 = scmp.eq.s32.totalorder %s27, 1
      %p45 = por %p43, %p44
      %p46 = scmp.ne.s32.totalorder %s35, %s36
      %p47 = scmp.eq.s32.totalorder %s27, 0
      %p48 = por %p46, %p47
      %p49 = scmp.ne.s32.totalorder %s35, %s36
      %p50 = scmp.eq.s32.totalorder %s28, 1
      %p51 = por %p49, %p50
      %p53 = scmp.ne.s32.totalorder %s36, %s52
      %p54 = scmp.eq.s32.totalorder %s28, 0
      %p55 = por %p53, %p54
      %s57 = sadd.s32 %s56, 1
      %p60 = scmp.eq.s32.totalorder %s22, 1
      %p61 = scmp.ne.s32.totalorder %s56, %s58
      %p62 = scmp.eq.s32.totalorder %s22, 0
      %p63 = por %p61, %p62
      %p64 = scmp.ne.s32.totalorder %s56, %s58
      %p65 = scmp.eq.s32.totalorder %s27, 1
      %p66 = por %p64, %p65
      %p67 = scmp.ne.s32.totalorder %s58, %s59
      %p68 = scmp.eq.s32.totalorder %s27, 0
      %p69 = por %p67, %p68
      %p70 = scmp.ne.s32.totalorder %s58, %s59
      %p71 = scmp.eq.s32.totalorder %s28, 1
      %p72 = por %p70, %p71
      %p74 = scmp.ne.s32.totalorder %s59, %s73
      %p75 = scmp.eq.s32.totalorder %s28, 0
      %p76 = por %p74, %p75
      %s78 = sadd.s32 %s77, 1
      %p81 = scmp.eq.s32.totalorder %s22, 1
      %p82 = scmp.ne.s32.totalorder %s77, %s79
      %p83 = scmp.eq.s32.totalorder %s22, 0
      %p84 = por %p82, %p83
      %p85 = scmp.ne.s32.totalorder %s77, %s79
      %p86 = scmp.eq.s32.totalorder %s27, 1
      %p87 = por %p85, %p86
      %p88 = scmp.ne.s32.totalorder %s79, %s80
      %p89 = scmp.eq.s32.totalorder %s27, 0
      %p90 = por %p88, %p89
      %p91 = scmp.ne.s32.totalorder %s79, %s80
      %p92 = scmp.eq.s32.totalorder %s28, 1
      %p93 = por %p91, %p92
      %p95 = scmp.ne.s32.totalorder %s80, %s94
      %p96 = scmp.eq.s32.totalorder %s28, 0
      %p97 = por %p95, %p96
      %s99 = sadd.s32 %s98, 1
      %p102 = scmp.eq.s32.totalorder %s22, 1
      %p103 = scmp.ne.s32.totalorder %s98, %s100
      %p104 = scmp.eq.s32.totalorder %s22, 0
      %p105 = por %p103, %p104
      %p106 = scmp.ne.s32.totalorder %s98, %s100
      %p107 = scmp.eq.s32.totalorder %s27, 1
      %p108 = por %p106, %p107
      %p109 = scmp.ne.s32.totalorder %s100, %s101
      %p110 = scmp.eq.s32.totalorder %s27, 0
      %p111 = por %p109, %p110
      %p112 = scmp.ne.s32.totalorder %s100, %s101
      %p113 = scmp.eq.s32.totalorder %s28, 1
      %p114 = por %p112, %p113
      %p116 = scmp.ne.s32.totalorder %s101, %s115
      %p117 = scmp.eq.s32.totalorder %s28, 0
      %p118 = por %p116, %p117
      %s120 = sadd.s32 %s119, 1
      %p123 = scmp.eq.s32.totalorder %s22, 1
      %p124 = scmp.ne.s32.totalorder %s119, %s121
      %p125 = scmp.eq.s32.totalorder %s22, 0
      %p126 = por %p124, %p125
      %p127 = scmp.ne.s32.totalorder %s119, %s121
      %p128 = scmp.eq.s32.totalorder %s27, 1
      %p129 = por %p127, %p128
      %p130 = scmp.ne.s32.totalorder %s121, %s122
      %p131 = scmp.eq.s32.totalorder %s27, 0
      %p132 = por %p130, %p131
      %p133 = scmp.ne.s32.totalorder %s121, %s122
      %p134 = scmp.eq.s32.totalorder %s28, 1
      %p135 = por %p133, %p134
      %p137 = scmp.ne.s32.totalorder %s122, %s136
      %p138 = scmp.eq.s32.totalorder %s28, 0
      %p139 = por %p137, %p138
      %s141 = sadd.s32 %s140, 1
      %p144 = scmp.eq.s32.totalorder %s22, 1
      %p145 = scmp.ne.s32.totalorder %s140, %s142
      %p146 = scmp.eq.s32.totalorder %s22, 0
      %p147 = por %p145, %p146
      %p148 = scmp.ne.s32.totalorder %s140, %s142
      %p149 = scmp.eq.s32.totalorder %s27, 1
      %p150 = por %p148, %p149
      %p151 = scmp.ne.s32.totalorder %s142, %s143
      %p152 = scmp.eq.s32.totalorder %s27, 0
      %p153 = por %p151, %p152
      %p154 = scmp.ne.s32.totalorder %s142, %s143
      %p155 = scmp.eq.s32.totalorder %s28, 1
      %p156 = por %p154, %p155
      %p158 = scmp.ne.s32.totalorder %s143, %s157
      %p159 = scmp.eq.s32.totalorder %s28, 0
      %p160 = por %p158, %p159
      %s162 = sadd.s32 %s161, 1
      %p165 = scmp.eq.s32.totalorder %s22, 1
      %p166 = scmp.ne.s32.totalorder %s161, %s163
      %p167 = scmp.eq.s32.totalorder %s22, 0
      %p168 = por %p166, %p167
      %p169 = scmp.ne.s32.totalorder %s161, %s163
      %p170 = scmp.eq.s32.totalorder %s27, 1
      %p171 = por %p169, %p170
      %p172 = scmp.ne.s32.totalorder %s163, %s164
      %p173 = scmp.eq.s32.totalorder %s27, 0
      %p174 = por %p172, %p173
      %p175 = scmp.ne.s32.totalorder %s163, %s164
      %p176 = scmp.eq.s32.totalorder %s28, 1
      %p177 = por %p175, %p176
      %p179 = scmp.ne.s32.totalorder %s164, %s178
      %p180 = scmp.eq.s32.totalorder %s28, 0
      %p181 = por %p179, %p180
      %s183 = sadd.s32 %s182, 1
      %p186 = scmp.eq.s32.totalorder %s22, 1
      %p187 = scmp.ne.s32.totalorder %s182, %s184
      %p188 = scmp.eq.s32.totalorder %s22, 0
      %p189 = por %p187, %p188
      %p190 = scmp.ne.s32.totalorder %s182, %s184
      %p191 = scmp.eq.s32.totalorder %s27, 1
      %p192 = por %p190, %p191
      %p193 = scmp.ne.s32.totalorder %s184, %s185
      %p194 = scmp.eq.s32.totalorder %s27, 0
      %p195 = por %p193, %p194
      %p196 = scmp.ne.s32.totalorder %s184, %s185
      %p197 = scmp.eq.s32.totalorder %s28, 1
      %p198 = por %p196, %p197
      %p200 = scmp.ne.s32.totalorder %s185, %s199
      %p201 = scmp.eq.s32.totalorder %s28, 0
      %p202 = por %p200, %p201
      %s204 = sadd.s32 %s203, 1
      %p207 = scmp.eq.s32.totalorder %s22, 1
      %p208 = scmp.ne.s32.totalorder %s203, %s205
      %p209 = scmp.eq.s32.totalorder %s22, 0
      %p210 = por %p208, %p209
      %p211 = scmp.ne.s32.totalorder %s203, %s205
      %p212 = scmp.eq.s32.totalorder %s27, 1
      %p213 = por %p211, %p212
      %p214 = scmp.ne.s32.totalorder %s205, %s206
      %p215 = scmp.eq.s32.totalorder %s27, 0
      %p216 = por %p214, %p215
      %p217 = scmp.ne.s32.totalorder %s205, %s206
      %p218 = scmp.eq.s32.totalorder %s28, 1
      %p219 = por %p217, %p218
      %p221 = scmp.ne.s32.totalorder %s206, %s220
      %p222 = scmp.eq.s32.totalorder %s28, 0
      %p223 = por %p221, %p222
      %s225 = sadd.s32 %s224, 1
      %p228 = scmp.eq.s32.totalorder %s22, 1
      %p229 = scmp.ne.s32.totalorder %s224, %s226
      %p230 = scmp.eq.s32.totalorder %s22, 0
      %p231 = por %p229, %p230
      %p232 = scmp.ne.s32.totalorder %s224, %s226
      %p233 = scmp.eq.s32.totalorder %s27, 1
      %p234 = por %p232, %p233
      %p235 = scmp.ne.s32.totalorder %s226, %s227
      %p236 = scmp.eq.s32.totalorder %s27, 0
      %p237 = por %p235, %p236
      %p238 = scmp.ne.s32.totalorder %s226, %s227
      %p239 = scmp.eq.s32.totalorder %s28, 1
      %p240 = por %p238, %p239
      %p242 = scmp.ne.s32.totalorder %s227, %s241
      %p243 = scmp.eq.s32.totalorder %s28, 0
      %p244 = por %p242, %p243
      %s246 = sadd.s32 %s245, 1
      %p249 = scmp.eq.s32.totalorder %s22, 1
      %p250 = scmp.ne.s32.totalorder %s245, %s247
      %p251 = scmp.eq.s32.totalorder %s22, 0
      %p252 = por %p250, %p251
      %p253 = scmp.ne.s32.totalorder %s245, %s247
      %p254 = scmp.eq.s32.totalorder %s27, 1
      %p255 = por %p253, %p254
      %p256 = scmp.ne.s32.totalorder %s247, %s248
      %p257 = scmp.eq.s32.totalorder %s27, 0
      %p258 = por %p256, %p257
      %p259 = scmp.ne.s32.totalorder %s247, %s248
      %p260 = scmp.eq.s32.totalorder %s28, 1
      %p261 = por %p259, %p260
      %p263 = scmp.ne.s32.totalorder %s248, %s262
      %p264 = scmp.eq.s32.totalorder %s28, 0
      %p265 = por %p263, %p264
      %s266 = ssub.s32 %s22, %s29
      %p267 = scmp.eq.s32.totalorder %s266, 0
      %s269 = sadd.s32 %s268, 1
      %s270 = scalar_select %p267, %s268, %s269
      %p273 = pneg %p267
      %p274 = scmp.eq.s32.totalorder %s22, 1
      %p275 = por %p273, %p274
      %p276 = scmp.ne.s32.totalorder %s268, %s271
      %p277 = scmp.eq.s32.totalorder %s22, 0
      %p278 = por %p276, %p277
      %p279 = scmp.ne.s32.totalorder %s268, %s271
      %p280 = scmp.eq.s32.totalorder %s27, 1
      %p281 = por %p279, %p280
      %p282 = scmp.ne.s32.totalorder %s271, %s272
      %p283 = scmp.eq.s32.totalorder %s27, 0
      %p284 = por %p282, %p283
      %p285 = scmp.ne.s32.totalorder %s271, %s272
      %p286 = scmp.eq.s32.totalorder %s28, 1
      %p287 = por %p285, %p286
      %p289 = scmp.ne.s32.totalorder %s272, %s288
      %p290 = scmp.eq.s32.totalorder %s28, 0
      %p291 = por %p289, %p290
      %p292 = scmp.le.s32.totalorder 1, %s22
      %p293 = scmp.lt.s32.totalorder %s22, 3
      %p294 = pnand %p292, %p293
      %p295 = pneg %p294
      // Predicated region
      $region9: #{tpu_custom_call.1} parent=5 // pred_check
        _
      $region10: #{tpu_custom_call.1} parent=5 // pred_check_branch
        %297 = sbr.rel (%p294) target = $region12
      $region11: #{tpu_custom_call.1} parent=5 // pred_region
        %s298 = ssub.s32 %s22, 1
        // Predicated region
        $region13: #{tpu_custom_call.1} parent=11 // pred_check
          %p299 = pneg %p69
        $region14: #{tpu_custom_call.1} parent=11 // pred_check_branch
          %301 = sbr.rel (%p299) target = $region16
        $region15: #{tpu_custom_call.1} parent=11 // pred_region
          _
        $region16: #{tpu_custom_call.1} parent=11 // pred_fallthru
          _
        // Predicated region
        $region17: #{tpu_custom_call.1} parent=11 // pred_check
          %p302 = pneg %p90
        $region18: #{tpu_custom_call.1} parent=11 // pred_check_branch
          %304 = sbr.rel (%p302) target = $region20
        $region19: #{tpu_custom_call.1} parent=11 // pred_region
          %306 = vsyncadd [#allocation4], 0
          %s308 = sshll.u32 %s2, 4
          %s309 = int_to_ptr.hbm [resolvable:$true] %s308
          %s310 = sshll.u32 [#allocation3], 4
          %s311 = int_to_ptr.vmem [resolvable:$true] %s310
          %313 = dma.hbm_to_vmem [thread:$0]  %s309, 48, %s311, [#allocation4]
        $region20: #{tpu_custom_call.1} parent=11 // pred_fallthru
          _
        // Predicated region
        $region21: #{tpu_custom_call.1} parent=11 // pred_check
          %p314 = pneg %p111
        $region22: #{tpu_custom_call.1} parent=11 // pred_check_branch
          %316 = sbr.rel (%p314) target = $region24
        $region23: #{tpu_custom_call.1} parent=11 // pred_region
          %318 = vsyncadd [#allocation7], 0
          %s319 = sshll.u32 %s3, 4
          %s320 = int_to_ptr.hbm [resolvable:$true] %s319
          %s321 = sshll.u32 [#allocation6], 4
          %s322 = int_to_ptr.vmem [resolvable:$true] %s321
          %327 = dma.hbm_to_vmem [thread:$0]  %s320, 9216, %s322, [#allocation7], 64, 64, 4
        $region24: #{tpu_custom_call.1} parent=11 // pred_fallthru
          _
        // Predicated region
        $region25: #{tpu_custom_call.1} parent=11 // pred_check
          %p328 = pneg %p132
        $region26: #{tpu_custom_call.1} parent=11 // pred_check_branch
          %330 = sbr.rel (%p328) target = $region28
        $region27: #{tpu_custom_call.1} parent=11 // pred_region
          _
        $region28: #{tpu_custom_call.1} parent=11 // pred_fallthru
          _
        // Predicated region
        $region29: #{tpu_custom_call.1} parent=11 // pred_check
          %p331 = pneg %p153
        $region30: #{tpu_custom_call.1} parent=11 // pred_check_branch
          %333 = sbr.rel (%p331) target = $region32
        $region31: #{tpu_custom_call.1} parent=11 // pred_region
          _
        $region32: #{tpu_custom_call.1} parent=11 // pred_fallthru
          _
        // Predicated region
        $region33: #{tpu_custom_call.1} parent=11 // pred_check
          %p334 = pneg %p174
        $region34: #{tpu_custom_call.1} parent=11 // pred_check_branch
          %336 = sbr.rel (%p334) target = $region36
        $region35: #{tpu_custom_call.1} parent=11 // pred_region
          _
        $region36: #{tpu_custom_call.1} parent=11 // pred_fallthru
          _
        // Predicated region
        $region37: #{tpu_custom_call.1} parent=11 // pred_check
          %p337 = pneg %p195
        $region38: #{tpu_custom_call.1} parent=11 // pred_check_branch
          %339 = sbr.rel (%p337) target = $region40
        $region39: #{tpu_custom_call.1} parent=11 // pred_region
          _
        $region40: #{tpu_custom_call.1} parent=11 // pred_fallthru
          _
        // Predicated region
        $region41: #{tpu_custom_call.1} parent=11 // pred_check
          %p340 = pneg %p216
        $region42: #{tpu_custom_call.1} parent=11 // pred_check_branch
          %342 = sbr.rel (%p340) target = $region44
        $region43: #{tpu_custom_call.1} parent=11 // pred_region
          _
        $region44: #{tpu_custom_call.1} parent=11 // pred_fallthru
          _
        // Predicated region
        $region45: #{tpu_custom_call.1} parent=11 // pred_check
          %p343 = pneg %p237
        $region46: #{tpu_custom_call.1} parent=11 // pred_check_branch
          %345 = sbr.rel (%p343) target = $region48
        $region47: #{tpu_custom_call.1} parent=11 // pred_region
          %347 = vsyncadd [#allocation7], 0
          %s348 = sshll.u32 %s9, 4
          %s349 = int_to_ptr.hbm [resolvable:$true] %s348
          %s350 = sshll.u32 [#allocation8], 4
          %s351 = int_to_ptr.vmem [resolvable:$true] %s350
          %356 = dma.hbm_to_vmem [thread:$0]  %s349, 512, %s351, [#allocation7], 256, 256, 16
        $region48: #{tpu_custom_call.1} parent=11 // pred_fallthru
          _
        // Predicated region
        $region49: #{tpu_custom_call.1} parent=11 // pred_check
          %p357 = pneg %p258
        $region50: #{tpu_custom_call.1} parent=11 // pred_check_branch
          %359 = sbr.rel (%p357) target = $region52
        $region51: #{tpu_custom_call.1} parent=11 // pred_region
          _
        $region52: #{tpu_custom_call.1} parent=11 // pred_fallthru
          _
      $region12: #{tpu_custom_call.1} parent=5 // pred_fallthru
        _
      %p360 = scmp.lt.s32.totalorder %s22, 2
      // Predicated region
      $region53: #{tpu_custom_call.1} parent=5 // pred_check
        %p361 = pneg %p360
      $region54: #{tpu_custom_call.1} parent=5 // pred_check_branch
        %363 = sbr.rel (%p361) target = $region56
      $region55: #{tpu_custom_call.1} parent=5 // pred_region
        // Predicated region
        $region57: #{tpu_custom_call.1} parent=55 // pred_check
          %p364 = pneg %p42
        $region58: #{tpu_custom_call.1} parent=55 // pred_check_branch
          %366 = sbr.rel (%p364) target = $region60
        $region59: #{tpu_custom_call.1} parent=55 // pred_region
          %p367 = scmp.lt.s32.totalorder %s22, 1
          %s368 = scalar_select %p367, %s22, 1
          %s369 = smul.addr %s368, 8
          %s370 = smul.addr %s369, 4
          %s371 = scalar_lea.vmem %s0, %s370
        $region60: #{tpu_custom_call.1} parent=55 // pred_fallthru
          _
      $region56: #{tpu_custom_call.1} parent=5 // pred_fallthru
        _
      %p372 = scmp.le.s32.totalorder 1, %s22
      %p373 = scmp.lt.s32.totalorder %s22, 3
      %p374 = pnand %p372, %p373
      %p375 = pneg %p374
      // Predicated region
      $region61: #{tpu_custom_call.1} parent=5 // pred_check
        _
      $region62: #{tpu_custom_call.1} parent=5 // pred_check_branch
        %377 = sbr.rel (%p374) target = $region64
      $region63: #{tpu_custom_call.1} parent=5 // pred_region
        %s378 = ssub.s32 %s22, 1
        // Predicated region
        $region65: #{tpu_custom_call.1} parent=63 // pred_check
          %p379 = pneg %p90
        $region66: #{tpu_custom_call.1} parent=63 // pred_check_branch
          %381 = sbr.rel (%p379) target = $region68
        $region67: #{tpu_custom_call.1} parent=63 // pred_region
          %383 = dma.done [#allocation4], 48
        $region68: #{tpu_custom_call.1} parent=63 // pred_fallthru
          _
        // Predicated region
        $region69: #{tpu_custom_call.1} parent=63 // pred_check
          %p384 = pneg %p111
        $region70: #{tpu_custom_call.1} parent=63 // pred_check_branch
          %386 = sbr.rel (%p384) target = $region72
        $region71: #{tpu_custom_call.1} parent=63 // pred_region
          %388 = dma.done [#allocation7], 9216
        $region72: #{tpu_custom_call.1} parent=63 // pred_fallthru
          _
        // Predicated region
        $region73: #{tpu_custom_call.1} parent=63 // pred_check
          %p389 = pneg %p237
        $region74: #{tpu_custom_call.1} parent=63 // pred_check_branch
          %391 = sbr.rel (%p389) target = $region76
        $region75: #{tpu_custom_call.1} parent=63 // pred_region
          %393 = dma.done [#allocation7], 512
        $region76: #{tpu_custom_call.1} parent=63 // pred_fallthru
          _
        %p394 = scmp.lt.s32.totalorder %s27, 1
        %s395 = scalar_select %p394, %s27, 1
        %s396 = smul.addr %s395, 8
        %s397 = smul.addr %s396, 4
        %s398 = scalar_lea.vmem %s0, %s397
        %p399 = pneg %p48
        %p400 = pneg %p45
        %p401 = pneg %p69
        %p402 = pneg %p66
        %p403 = pneg %p90
        %p404 = pneg %p87
        %p405 = pneg %p111
        %p406 = pneg %p108
        %p407 = pneg %p132
        %p408 = pneg %p129
        %p409 = pneg %p153
        %p410 = pneg %p150
        %p411 = pneg %p174
        %p412 = pneg %p171
        %p413 = pneg %p195
        %p414 = pneg %p192
        %p415 = pneg %p216
        %p416 = pneg %p213
        %p417 = pneg %p237
        %p418 = pneg %p234
        %p419 = pneg %p258
        %p420 = pneg %p255
        %p421 = pneg %p284
        %p422 = pneg %p281
        %s423 = sand.u32 %s271, 1
        %s424 = scalar_lea.sflag [#allocation5], %s423
        %s425 = sand.u32 %s271, 1
        %s426 = smul.addr %s425, 128
        %s427 = scalar_lea.vmem [#allocation9], %s426
        %p428 = scmp.lt.s32.totalorder %s27, 1
        %s429 = scalar_select %p428, %s27, 1
        %s430 = smul.addr %s429, 8
        %s431 = smul.addr %s430, 4
        %s432 = scalar_lea.vmem %s0, %s431
        %v434 = vld [vmem:[%s432] sm:$0xf]
        %v435 = vld [vmem:[%s432 + $0x4] sm:$0xf]
        %v436 = vld [vmem:[%s432 + $0x8] sm:$0xf]
        %v437 = vld [vmem:[%s432 + $0xc] sm:$0xf]
        %v438 = vld [vmem:[%s432 + $0x10] sm:$0xf]
        %v439 = vld [vmem:[%s432 + $0x14] sm:$0xf]
        %v440 = vld [vmem:[%s432 + $0x18] sm:$0xf]
        %v441 = vld [vmem:[%s432 + $0x1c] sm:$0xf]
        %v442 = vld [vmem:[%s1] sm:$0xff]
        %v443 = vld [vmem:[%s1 + $0x8] sm:$0xf]
        %v444 = vld [vmem:[%s1 + $0xc] sm:$0xff]
        %v445 = vld [vmem:[%s1 + $0x14] sm:$0xf]
        %v446 = vld [vmem:[%s1 + $0x18] sm:$0xff]
        %v447 = vld [vmem:[%s1 + $0x20] sm:$0xf]
        %v448 = vld [vmem:[%s1 + $0x24] sm:$0xff]
        %v449 = vld [vmem:[%s1 + $0x2c] sm:$0xf]
        %v450 = vld [vmem:[%s1 + $0x30] sm:$0xff]
        %v451 = vld [vmem:[%s1 + $0x38] sm:$0xf]
        %v452 = vld [vmem:[%s1 + $0x3c] sm:$0xff]
        %v453 = vld [vmem:[%s1 + $0x44] sm:$0xf]
        %v454 = vld [vmem:[%s1 + $0x48] sm:$0xff]
        %v455 = vld [vmem:[%s1 + $0x50] sm:$0xf]
        %v456 = vld [vmem:[%s1 + $0x54] sm:$0xff]
        %v457 = vld [vmem:[%s1 + $0x5c] sm:$0xf]
        %v458 = vld [vmem:[#allocation3] sm:$0x7]
        %v460 = vperm.slane %v458, 0
        %v461 = vperm.slane %v458, 1
        %v462 = vperm.slane %v458, 2
        %v474 = vunpack.c.l.b16 %v434
        %v475 = vunpack.c.l.b16 %v435
        %v476 = vunpack.c.l.b16 %v436
        %v477 = vunpack.c.l.b16 %v437
        %v478 = vunpack.c.l.b16 %v438
        %v479 = vunpack.c.l.b16 %v439
        %v480 = vunpack.c.l.b16 %v440
        %v481 = vunpack.c.l.b16 %v441
        %v482 = vpack.c.b16 %v475, %v474
        %v483 = vpack.c.b16 %v477, %v476
        %v484 = vpack.c.b16 %v479, %v478
        %v485 = vpack.c.b16 %v481, %v480
        %v502 = vunpack.c.l.b16 %v442
        %v503 = vunpack.c.h.b16 %v442
        %v504 = vunpack.c.l.b16 %v443
        %v505 = vunpack.c.l.b16 %v444
        %v506 = vunpack.c.h.b16 %v444
        %v507 = vunpack.c.l.b16 %v445
        %v508 = vunpack.c.l.b16 %v446
        %v509 = vunpack.c.h.b16 %v446
        %v510 = vunpack.c.l.b16 %v447
        %v511 = vunpack.c.l.b16 %v448
        %v512 = vunpack.c.h.b16 %v448
        %v513 = vunpack.c.l.b16 %v449
        %v514 = vunpack.c.l.b16 %v450
        %v515 = vunpack.c.h.b16 %v450
        %v516 = vunpack.c.l.b16 %v451
        %v517 = vunpack.c.l.b16 %v452
        %v518 = vunpack.c.h.b16 %v452
        %v519 = vunpack.c.l.b16 %v453
        %v520 = vunpack.c.l.b16 %v454
        %v521 = vunpack.c.h.b16 %v454
        %v522 = vunpack.c.l.b16 %v455
        %v523 = vunpack.c.l.b16 %v456
        %v524 = vunpack.c.h.b16 %v456
        %v525 = vunpack.c.l.b16 %v457
        %v526 = vpack.c.b16 %v505, %v502
        %v527 = vpack.c.b16 %v506, %v503
        %v528 = vpack.c.b16 %v507, %v504
        %v529 = vpack.c.b16 %v511, %v508
        %v530 = vpack.c.b16 %v512, %v509
        %v531 = vpack.c.b16 %v513, %v510
        %v532 = vpack.c.b16 %v517, %v514
        %v533 = vpack.c.b16 %v518, %v515
        %v534 = vpack.c.b16 %v519, %v516
        %v535 = vpack.c.b16 %v523, %v520
        %v536 = vpack.c.b16 %v524, %v521
        %v537 = vpack.c.b16 %v525, %v522
        %vm550 = vcmask 523264
        %v552 = vsel %vm550, %v482, 0
        %v555 = vsel %vm550, %v483, 0
        %v558 = vsel %vm550, %v484, 0
        %v561 = vsel %vm550, %v485, 0
        %563 = vmatpush.bf16.msra.mxu0 0
        %564 = vmatpush.bf16.msra.mxu0 0
        %565 = vmatpush.bf16.msra.mxu0 0
        %566 = vmatpush.bf16.msra.mxu0 0
        %567 = vmatpush.bf16.msra.mxu0 %v535
        %568 = vmatpush.bf16.msra.mxu0 %v532
        %569 = vmatpush.bf16.msra.mxu0 %v529
        %570 = vmatpush.bf16.msra.mxu0 %v526
        %571 = vmatmul.bf16.gmra.mxu0 %v552
        %v572 = vpop.f32.mrf.mxu0
        %v573 = vadd.f32 %v460, %v572
        %v574 = vpop.f32.mrf.mxu0
        %v575 = vadd.f32 %v460, %v574
        %576 = vmatmul.bf16.gmra.mxu0 %v555
        %v577 = vpop.f32.mrf.mxu0
        %v578 = vadd.f32 %v460, %v577
        %v579 = vpop.f32.mrf.mxu0
        %v580 = vadd.f32 %v460, %v579
        %581 = vmatmul.bf16.gmra.mxu0 %v558
        %v582 = vpop.f32.mrf.mxu0
        %v583 = vadd.f32 %v460, %v582
        %v584 = vpop.f32.mrf.mxu0
        %v585 = vadd.f32 %v460, %v584
        %586 = vmatmul.bf16.gmra.mxu0 %v561
        %v587 = vpop.f32.mrf.mxu0
        %v588 = vadd.f32 %v460, %v587
        %v589 = vpop.f32.mrf.mxu0
        %v590 = vadd.f32 %v460, %v589
        %591 = vdwg.mxu0
        %592 = vmatpush.bf16.msra.mxu0 0
        %593 = vmatpush.bf16.msra.mxu0 0
        %594 = vmatpush.bf16.msra.mxu0 0
        %595 = vmatpush.bf16.msra.mxu0 0
        %596 = vmatpush.bf16.msra.mxu0 %v536
        %597 = vmatpush.bf16.msra.mxu0 %v533
        %598 = vmatpush.bf16.msra.mxu0 %v530
        %599 = vmatpush.bf16.msra.mxu0 %v527
        %600 = vmatmul.bf16.gmra.mxu0 %v552
        %v601 = vpop.f32.mrf.mxu0
        %v602 = vadd.f32 %v461, %v601
        %v603 = vpop.f32.mrf.mxu0
        %v604 = vadd.f32 %v461, %v603
        %605 = vmatmul.bf16.gmra.mxu0 %v555
        %v606 = vpop.f32.mrf.mxu0
        %v607 = vadd.f32 %v461, %v606
        %v608 = vpop.f32.mrf.mxu0
        %v609 = vadd.f32 %v461, %v608
        %610 = vmatmul.bf16.gmra.mxu0 %v558
        %v611 = vpop.f32.mrf.mxu0
        %v612 = vadd.f32 %v461, %v611
        %v613 = vpop.f32.mrf.mxu0
        %v614 = vadd.f32 %v461, %v613
        %615 = vmatmul.bf16.gmra.mxu0 %v561
        %v616 = vpop.f32.mrf.mxu0
        %v617 = vadd.f32 %v461, %v616
        %v618 = vpop.f32.mrf.mxu0
        %v619 = vadd.f32 %v461, %v618
        %620 = vdwg.mxu0
        %621 = vmatpush.bf16.msra.mxu0 0
        %622 = vmatpush.bf16.msra.mxu0 0
        %623 = vmatpush.bf16.msra.mxu0 0
        %624 = vmatpush.bf16.msra.mxu0 0
        %625 = vmatpush.bf16.msra.mxu0 %v537
        %626 = vmatpush.bf16.msra.mxu0 %v534
        %627 = vmatpush.bf16.msra.mxu0 %v531
        %628 = vmatpush.bf16.msra.mxu0 %v528
        %629 = vmatmul.bf16.gmra.mxu0 %v552
        %v630 = vpop.f32.mrf.mxu0
        %v631 = vadd.f32 %v462, %v630
        %v632 = vpop.f32.mrf.mxu0
        %v633 = vadd.f32 %v462, %v632
        %634 = vmatmul.bf16.gmra.mxu0 %v555
        %v635 = vpop.f32.mrf.mxu0
        %v636 = vadd.f32 %v462, %v635
        %v637 = vpop.f32.mrf.mxu0
        %v638 = vadd.f32 %v462, %v637
        %639 = vmatmul.bf16.gmra.mxu0 %v558
        %v640 = vpop.f32.mrf.mxu0
        %v641 = vadd.f32 %v462, %v640
        %v642 = vpop.f32.mrf.mxu0
        %v643 = vadd.f32 %v462, %v642
        %644 = vmatmul.bf16.gmra.mxu0 %v561
        %v645 = vpop.f32.mrf.mxu0
        %v646 = vadd.f32 %v462, %v645
        %v647 = vpop.f32.mrf.mxu0
        %v648 = vadd.f32 %v462, %v647
        %649 = vdwg.mxu0
        %v650 = vmax.f32 %v573, 0.0
        %v651 = vmax.f32 %v575, 0.0
        %v652 = vmax.f32 %v578, 0.0
        %v653 = vmax.f32 %v580, 0.0
        %v654 = vmax.f32 %v583, 0.0
        %v655 = vmax.f32 %v585, 0.0
        %v656 = vmax.f32 %v588, 0.0
        %v657 = vmax.f32 %v590, 0.0
        %v658 = vpack.c.bf16 %v650, %v650
        %v659 = vpack.c.bf16 %v651, %v651
        %v660 = vpack.c.bf16 %v652, %v652
        %v661 = vpack.c.bf16 %v653, %v653
        %v662 = vpack.c.bf16 %v654, %v654
        %v663 = vpack.c.bf16 %v655, %v655
        %v664 = vpack.c.bf16 %v656, %v656
        %v665 = vpack.c.bf16 %v657, %v657
        %v667 = vshrl.u32 %v658, 16
        %v669 = vrot.slane %v667, 7
        %v670 = vshll.u32 %v658, 16
        %v672 = vor.u32 %v669, %v670
        %v673 = vrot.slane %v669, 4
        %v675 = vshrl.u32 %v659, 16
        %v677 = vrot.slane %v675, 7
        %v678 = vshll.u32 %v659, 16
        %v680 = vor.u32 %v677, %v678
        %v681 = vrot.slane %v677, 4
        %v683 = vshrl.u32 %v660, 16
        %v685 = vrot.slane %v683, 7
        %v686 = vshll.u32 %v660, 16
        %v688 = vor.u32 %v685, %v686
        %v689 = vrot.slane %v685, 4
        %v691 = vshrl.u32 %v661, 16
        %v693 = vrot.slane %v691, 7
        %v694 = vshll.u32 %v661, 16
        %v696 = vor.u32 %v693, %v694
        %v697 = vrot.slane %v693, 4
        %v699 = vshrl.u32 %v662, 16
        %v701 = vrot.slane %v699, 7
        %v702 = vshll.u32 %v662, 16
        %v704 = vor.u32 %v701, %v702
        %v705 = vrot.slane %v701, 4
        %v707 = vshrl.u32 %v663, 16
        %v709 = vrot.slane %v707, 7
        %v710 = vshll.u32 %v663, 16
        %v712 = vor.u32 %v709, %v710
        %v713 = vrot.slane %v709, 4
        %v715 = vshrl.u32 %v664, 16
        %v717 = vrot.slane %v715, 7
        %v718 = vshll.u32 %v664, 16
        %v720 = vor.u32 %v717, %v718
        %v721 = vrot.slane %v717, 4
        %v723 = vshrl.u32 %v665, 16
        %v725 = vrot.slane %v723, 7
        %v726 = vshll.u32 %v665, 16
        %v728 = vor.u32 %v725, %v726
        %v729 = vrot.slane %v725, 4
        %s746 = scalar_lea.vmem [#allocation2], 8
        %vm747 = vcmask 1043456
        %vm748 = vsmask.f32 7938
        %vm749 = vmand %vm747, %vm748
        %v750 = vld [vmem:[%s746] sm:$0xf]
        %v751 = vsel %vm749, %v672, %v750
        %752 = vst [vmem:[%s746] sm:$0xf] %v751
        %vm753 = vcmask 1040384
        %vm754 = vsmask.f32 256
        %vm755 = vmand %vm753, %vm754
        %v756 = vld [vmem:[%s746 + $0x4] sm:$0x1]
        %v757 = vsel %vm755, %v673, %v756
        %758 = vst [vmem:[%s746 + $0x4] sm:$0x1] %v757
        %v759 = vld [vmem:[%s746 + $0x8] sm:$0xf]
        %v760 = vsel %vm749, %v680, %v759
        %761 = vst [vmem:[%s746 + $0x8] sm:$0xf] %v760
        %v762 = vld [vmem:[%s746 + $0xc] sm:$0x1]
        %v763 = vsel %vm755, %v681, %v762
        %764 = vst [vmem:[%s746 + $0xc] sm:$0x1] %v763
        %v765 = vld [vmem:[%s746 + $0x10] sm:$0xf]
        %v766 = vsel %vm749, %v688, %v765
        %767 = vst [vmem:[%s746 + $0x10] sm:$0xf] %v766
        %v768 = vld [vmem:[%s746 + $0x14] sm:$0x1]
        %v769 = vsel %vm755, %v689, %v768
        %770 = vst [vmem:[%s746 + $0x14] sm:$0x1] %v769
        %v771 = vld [vmem:[%s746 + $0x18] sm:$0xf]
        %v772 = vsel %vm749, %v696, %v771
        %773 = vst [vmem:[%s746 + $0x18] sm:$0xf] %v772
        %v774 = vld [vmem:[%s746 + $0x1c] sm:$0x1]
        %v775 = vsel %vm755, %v697, %v774
        %776 = vst [vmem:[%s746 + $0x1c] sm:$0x1] %v775
        %v777 = vld [vmem:[%s746 + $0x20] sm:$0xf]
        %v778 = vsel %vm749, %v704, %v777
        %779 = vst [vmem:[%s746 + $0x20] sm:$0xf] %v778
        %v780 = vld [vmem:[%s746 + $0x24] sm:$0x1]
        %v781 = vsel %vm755, %v705, %v780
        %782 = vst [vmem:[%s746 + $0x24] sm:$0x1] %v781
        %v783 = vld [vmem:[%s746 + $0x28] sm:$0xf]
        %v784 = vsel %vm749, %v712, %v783
        %785 = vst [vmem:[%s746 + $0x28] sm:$0xf] %v784
        %v786 = vld [vmem:[%s746 + $0x2c] sm:$0x1]
        %v787 = vsel %vm755, %v713, %v786
        %788 = vst [vmem:[%s746 + $0x2c] sm:$0x1] %v787
        %v789 = vld [vmem:[%s746 + $0x30] sm:$0xf]
        %v790 = vsel %vm749, %v720, %v789
        %791 = vst [vmem:[%s746 + $0x30] sm:$0xf] %v790
        %v792 = vld [vmem:[%s746 + $0x34] sm:$0x1]
        %v793 = vsel %vm755, %v721, %v792
        %794 = vst [vmem:[%s746 + $0x34] sm:$0x1] %v793
        %v795 = vld [vmem:[%s746 + $0x38] sm:$0xf]
        %v796 = vsel %vm749, %v728, %v795
        %797 = vst [vmem:[%s746 + $0x38] sm:$0xf] %v796
        %v798 = vld [vmem:[%s746 + $0x3c] sm:$0x1]
        %v799 = vsel %vm755, %v729, %v798
        %800 = vst [vmem:[%s746 + $0x3c] sm:$0x1] %v799
        %801 = vst [vmem:[#allocation2] sm:$0xf] 0
        %802 = vst [vmem:[#allocation2 + $0x4] sm:$0x1] 0
        %s803 = scalar_lea.vmem [#allocation2], 72
        %804 = vst [vmem:[%s803] sm:$0xf] 0
        %805 = vst [vmem:[%s803 + $0x4] sm:$0x1] 0
        %v806 = vld [vmem:[#allocation2] sm:$0x1]
        %v807 = vsel %vm755, 0, %v806
        %808 = vst [vmem:[#allocation2] sm:$0x1] %v807
        %v809 = vld [vmem:[#allocation2 + $0x8] sm:$0x1]
        %v810 = vsel %vm755, 0, %v809
        %811 = vst [vmem:[#allocation2 + $0x8] sm:$0x1] %v810
        %v812 = vld [vmem:[#allocation2 + $0x10] sm:$0x1]
        %v813 = vsel %vm755, 0, %v812
        %814 = vst [vmem:[#allocation2 + $0x10] sm:$0x1] %v813
        %v815 = vld [vmem:[#allocation2 + $0x18] sm:$0x1]
        %v816 = vsel %vm755, 0, %v815
        %817 = vst [vmem:[#allocation2 + $0x18] sm:$0x1] %v816
        %v818 = vld [vmem:[#allocation2 + $0x20] sm:$0x1]
        %v819 = vsel %vm755, 0, %v818
        %820 = vst [vmem:[#allocation2 + $0x20] sm:$0x1] %v819
        %v821 = vld [vmem:[#allocation2 + $0x28] sm:$0x1]
        %v822 = vsel %vm755, 0, %v821
        %823 = vst [vmem:[#allocation2 + $0x28] sm:$0x1] %v822
        %v824 = vld [vmem:[#allocation2 + $0x30] sm:$0x1]
        %v825 = vsel %vm755, 0, %v824
        %826 = vst [vmem:[#allocation2 + $0x30] sm:$0x1] %v825
        %v827 = vld [vmem:[#allocation2 + $0x38] sm:$0x1]
        %v828 = vsel %vm755, 0, %v827
        %829 = vst [vmem:[#allocation2 + $0x38] sm:$0x1] %v828
        %v830 = vld [vmem:[#allocation2 + $0x40] sm:$0x1]
        %v831 = vsel %vm755, 0, %v830
        %832 = vst [vmem:[#allocation2 + $0x40] sm:$0x1] %v831
        %v833 = vld [vmem:[#allocation2 + $0x48] sm:$0x1]
        %v834 = vsel %vm755, 0, %v833
        %835 = vst [vmem:[#allocation2 + $0x48] sm:$0x1] %v834
        %vm836 = vmand %vm753, %vm748
        %v837 = vld [vmem:[#allocation2 + $0x4] sm:$0x1]
        %v838 = vsel %vm836, 0, %v837
        %839 = vst [vmem:[#allocation2 + $0x4] sm:$0x1] %v838
        %v840 = vld [vmem:[#allocation2 + $0xc] sm:$0x1]
        %v841 = vsel %vm836, 0, %v840
        %842 = vst [vmem:[#allocation2 + $0xc] sm:$0x1] %v841
        %v843 = vld [vmem:[#allocation2 + $0x14] sm:$0x1]
        %v844 = vsel %vm836, 0, %v843
        %845 = vst [vmem:[#allocation2 + $0x14] sm:$0x1] %v844
        %v846 = vld [vmem:[#allocation2 + $0x1c] sm:$0x1]
        %v847 = vsel %vm836, 0, %v846
        %848 = vst [vmem:[#allocation2 + $0x1c] sm:$0x1] %v847
        %v849 = vld [vmem:[#allocation2 + $0x24] sm:$0x1]
        %v850 = vsel %vm836, 0, %v849
        %851 = vst [vmem:[#allocation2 + $0x24] sm:$0x1] %v850
        %v852 = vld [vmem:[#allocation2 + $0x2c] sm:$0x1]
        %v853 = vsel %vm836, 0, %v852
        %854 = vst [vmem:[#allocation2 + $0x2c] sm:$0x1] %v853
        %v855 = vld [vmem:[#allocation2 + $0x34] sm:$0x1]
        %v856 = vsel %vm836, 0, %v855
        %857 = vst [vmem:[#allocation2 + $0x34] sm:$0x1] %v856
        %v858 = vld [vmem:[#allocation2 + $0x3c] sm:$0x1]
        %v859 = vsel %vm836, 0, %v858
        %860 = vst [vmem:[#allocation2 + $0x3c] sm:$0x1] %v859
        %v861 = vld [vmem:[#allocation2 + $0x44] sm:$0x1]
        %v862 = vsel %vm836, 0, %v861
        %863 = vst [vmem:[#allocation2 + $0x44] sm:$0x1] %v862
        %v864 = vld [vmem:[#allocation2 + $0x4c] sm:$0x1]
        %v865 = vsel %vm836, 0, %v864
        %866 = vst [vmem:[#allocation2 + $0x4c] sm:$0x1] %v865
        %v867 = vld [vmem:[#allocation2] sm:$0xf]
        %v868 = vld [vmem:[#allocation2 + $0x8] sm:$0xf]
        %v869 = vld [vmem:[#allocation2 + $0x10] sm:$0xf]
        %v870 = vld [vmem:[#allocation2 + $0x18] sm:$0xf]
        %v871 = vld [vmem:[#allocation2 + $0x20] sm:$0xf]
        %v872 = vld [vmem:[#allocation2 + $0x28] sm:$0xf]
        %v873 = vld [vmem:[#allocation2 + $0x30] sm:$0xf]
        %v874 = vld [vmem:[#allocation2 + $0x38] sm:$0xf]
        %v875 = vld [vmem:[#allocation2 + $0x4] sm:$0x1]
        %v876 = vld [vmem:[#allocation2 + $0xc] sm:$0x1]
        %v877 = vld [vmem:[#allocation2 + $0x14] sm:$0x1]
        %v878 = vld [vmem:[#allocation2 + $0x1c] sm:$0x1]
        %v879 = vld [vmem:[#allocation2 + $0x24] sm:$0x1]
        %v880 = vld [vmem:[#allocation2 + $0x2c] sm:$0x1]
        %v881 = vld [vmem:[#allocation2 + $0x34] sm:$0x1]
        %v882 = vld [vmem:[#allocation2 + $0x3c] sm:$0x1]
        %vm883 = vsmask.f32 3328
        %vm884 = vsmask.f32 7440
        %vm885 = vmor %vm883, %vm884
        %v887 = vshrl.u32 %v867, 16
        %v889 = vrot.slane %v887, 4
        %v890 = vshll.u32 %v867, 16
        %v892 = vrot.slane %v890, 5
        %v893 = vor.u32 %v889, %v892
        %v894 = vrot.slane %v893, 4
        %v896 = vshll.u32 %v875, 16
        %v898 = vrot.slane %v896, 5
        %v899 = vsel %vm885, %v894, %v898
        %v901 = vshrl.u32 %v868, 16
        %v903 = vrot.slane %v901, 4
        %v904 = vshll.u32 %v868, 16
        %v906 = vrot.slane %v904, 5
        %v907 = vor.u32 %v903, %v906
        %v908 = vrot.slane %v907, 4
        %v910 = vshll.u32 %v876, 16
        %v912 = vrot.slane %v910, 5
        %v913 = vsel %vm885, %v908, %v912
        %v915 = vshrl.u32 %v869, 16
        %v917 = vrot.slane %v915, 4
        %v918 = vshll.u32 %v869, 16
        %v920 = vrot.slane %v918, 5
        %v921 = vor.u32 %v917, %v920
        %v922 = vrot.slane %v921, 4
        %v924 = vshll.u32 %v877, 16
        %v926 = vrot.slane %v924, 5
        %v927 = vsel %vm885, %v922, %v926
        %v929 = vshrl.u32 %v870, 16
        %v931 = vrot.slane %v929, 4
        %v932 = vshll.u32 %v870, 16
        %v934 = vrot.slane %v932, 5
        %v935 = vor.u32 %v931, %v934
        %v936 = vrot.slane %v935, 4
        %v938 = vshll.u32 %v878, 16
        %v940 = vrot.slane %v938, 5
        %v941 = vsel %vm885, %v936, %v940
        %v943 = vshrl.u32 %v871, 16
        %v945 = vrot.slane %v943, 4
        %v946 = vshll.u32 %v871, 16
        %v948 = vrot.slane %v946, 5
        %v949 = vor.u32 %v945, %v948
        %v950 = vrot.slane %v949, 4
        %v952 = vshll.u32 %v879, 16
        %v954 = vrot.slane %v952, 5
        %v955 = vsel %vm885, %v950, %v954
        %v957 = vshrl.u32 %v872, 16
        %v959 = vrot.slane %v957, 4
        %v960 = vshll.u32 %v872, 16
        %v962 = vrot.slane %v960, 5
        %v963 = vor.u32 %v959, %v962
        %v964 = vrot.slane %v963, 4
        %v966 = vshll.u32 %v880, 16
        %v968 = vrot.slane %v966, 5
        %v969 = vsel %vm885, %v964, %v968
        %v971 = vshrl.u32 %v873, 16
        %v973 = vrot.slane %v971, 4
        %v974 = vshll.u32 %v873, 16
        %v976 = vrot.slane %v974, 5
        %v977 = vor.u32 %v973, %v976
        %v978 = vrot.slane %v977, 4
        %v980 = vshll.u32 %v881, 16
        %v982 = vrot.slane %v980, 5
        %v983 = vsel %vm885, %v978, %v982
        %v985 = vshrl.u32 %v874, 16
        %v987 = vrot.slane %v985, 4
        %v988 = vshll.u32 %v874, 16
        %v990 = vrot.slane %v988, 5
        %v991 = vor.u32 %v987, %v990
        %v992 = vrot.slane %v991, 4
        %v994 = vshll.u32 %v882, 16
        %v996 = vrot.slane %v994, 5
        %v997 = vsel %vm885, %v992, %v996
        %v998 = vld [vmem:[#allocation2] sm:$0xe]
        %v999 = vld [vmem:[#allocation2 + $0x8] sm:$0xe]
        %v1000 = vld [vmem:[#allocation2 + $0x10] sm:$0xe]
        %v1001 = vld [vmem:[#allocation2 + $0x18] sm:$0xe]
        %v1002 = vld [vmem:[#allocation2 + $0x20] sm:$0xe]
        %v1003 = vld [vmem:[#allocation2 + $0x28] sm:$0xe]
        %v1004 = vld [vmem:[#allocation2 + $0x30] sm:$0xe]
        %v1005 = vld [vmem:[#allocation2 + $0x38] sm:$0xe]
        %vm1022 = vcmask 1042432
        %vm1023 = vcmask 1046532
        %vm1024 = vmor %vm1022, %vm1023
        %v1025 = vrot.slane %v998, 5
        %v1026 = vrot.slane %v1025, 4
        %v1027 = vrot.slane %v875, 5
        %v1028 = vsel %vm1024, %v1026, %v1027
        %v1029 = vrot.slane %v999, 5
        %v1030 = vrot.slane %v1029, 4
        %v1031 = vrot.slane %v876, 5
        %v1032 = vsel %vm1024, %v1030, %v1031
        %v1033 = vrot.slane %v1000, 5
        %v1034 = vrot.slane %v1033, 4
        %v1035 = vrot.slane %v877, 5
        %v1036 = vsel %vm1024, %v1034, %v1035
        %v1037 = vrot.slane %v1001, 5
        %v1038 = vrot.slane %v1037, 4
        %v1039 = vrot.slane %v878, 5
        %v1040 = vsel %vm1024, %v1038, %v1039
        %v1041 = vrot.slane %v1002, 5
        %v1042 = vrot.slane %v1041, 4
        %v1043 = vrot.slane %v879, 5
        %v1044 = vsel %vm1024, %v1042, %v1043
        %v1045 = vrot.slane %v1003, 5
        %v1046 = vrot.slane %v1045, 4
        %v1047 = vrot.slane %v880, 5
        %v1048 = vsel %vm1024, %v1046, %v1047
        %v1049 = vrot.slane %v1004, 5
        %v1050 = vrot.slane %v1049, 4
        %v1051 = vrot.slane %v881, 5
        %v1052 = vsel %vm1024, %v1050, %v1051
        %v1053 = vrot.slane %v1005, 5
        %v1054 = vrot.slane %v1053, 4
        %v1055 = vrot.slane %v882, 5
        %v1056 = vsel %vm1024, %v1054, %v1055
        %v1057 = vld [vmem:[%s746] sm:$0xf]
        %v1058 = vld [vmem:[%s746 + $0x8] sm:$0xf]
        %v1059 = vld [vmem:[%s746 + $0x10] sm:$0xf]
        %v1060 = vld [vmem:[%s746 + $0x18] sm:$0xf]
        %v1061 = vld [vmem:[%s746 + $0x20] sm:$0xf]
        %v1062 = vld [vmem:[%s746 + $0x28] sm:$0xf]
        %v1063 = vld [vmem:[%s746 + $0x30] sm:$0xf]
        %v1064 = vld [vmem:[%s746 + $0x38] sm:$0xf]
        %v1065 = vld [vmem:[%s746 + $0x4] sm:$0x1]
        %v1066 = vld [vmem:[%s746 + $0xc] sm:$0x1]
        %v1067 = vld [vmem:[%s746 + $0x14] sm:$0x1]
        %v1068 = vld [vmem:[%s746 + $0x1c] sm:$0x1]
        %v1069 = vld [vmem:[%s746 + $0x24] sm:$0x1]
        %v1070 = vld [vmem:[%s746 + $0x2c] sm:$0x1]
        %v1071 = vld [vmem:[%s746 + $0x34] sm:$0x1]
        %v1072 = vld [vmem:[%s746 + $0x3c] sm:$0x1]
        %v1074 = vshrl.u32 %v1057, 16
        %v1076 = vrot.slane %v1074, 4
        %v1077 = vshll.u32 %v1057, 16
        %v1079 = vrot.slane %v1077, 5
        %v1080 = vor.u32 %v1076, %v1079
        %v1081 = vrot.slane %v1080, 4
        %v1083 = vshll.u32 %v1065, 16
        %v1085 = vrot.slane %v1083, 5
        %v1086 = vsel %vm885, %v1081, %v1085
        %v1088 = vshrl.u32 %v1058, 16
        %v1090 = vrot.slane %v1088, 4
        %v1091 = vshll.u32 %v1058, 16
        %v1093 = vrot.slane %v1091, 5
        %v1094 = vor.u32 %v1090, %v1093
        %v1095 = vrot.slane %v1094, 4
        %v1097 = vshll.u32 %v1066, 16
        %v1099 = vrot.slane %v1097, 5
        %v1100 = vsel %vm885, %v1095, %v1099
        %v1102 = vshrl.u32 %v1059, 16
        %v1104 = vrot.slane %v1102, 4
        %v1105 = vshll.u32 %v1059, 16
        %v1107 = vrot.slane %v1105, 5
        %v1108 = vor.u32 %v1104, %v1107
        %v1109 = vrot.slane %v1108, 4
        %v1111 = vshll.u32 %v1067, 16
        %v1113 = vrot.slane %v1111, 5
        %v1114 = vsel %vm885, %v1109, %v1113
        %v1116 = vshrl.u32 %v1060, 16
        %v1118 = vrot.slane %v1116, 4
        %v1119 = vshll.u32 %v1060, 16
        %v1121 = vrot.slane %v1119, 5
        %v1122 = vor.u32 %v1118, %v1121
        %v1123 = vrot.slane %v1122, 4
        %v1125 = vshll.u32 %v1068, 16
        %v1127 = vrot.slane %v1125, 5
        %v1128 = vsel %vm885, %v1123, %v1127
        %v1130 = vshrl.u32 %v1061, 16
        %v1132 = vrot.slane %v1130, 4
        %v1133 = vshll.u32 %v1061, 16
        %v1135 = vrot.slane %v1133, 5
        %v1136 = vor.u32 %v1132, %v1135
        %v1137 = vrot.slane %v1136, 4
        %v1139 = vshll.u32 %v1069, 16
        %v1141 = vrot.slane %v1139, 5
        %v1142 = vsel %vm885, %v1137, %v1141
        %v1144 = vshrl.u32 %v1062, 16
        %v1146 = vrot.slane %v1144, 4
        %v1147 = vshll.u32 %v1062, 16
        %v1149 = vrot.slane %v1147, 5
        %v1150 = vor.u32 %v1146, %v1149
        %v1151 = vrot.slane %v1150, 4
        %v1153 = vshll.u32 %v1070, 16
        %v1155 = vrot.slane %v1153, 5
        %v1156 = vsel %vm885, %v1151, %v1155
        %v1158 = vshrl.u32 %v1063, 16
        %v1160 = vrot.slane %v1158, 4
        %v1161 = vshll.u32 %v1063, 16
        %v1163 = vrot.slane %v1161, 5
        %v1164 = vor.u32 %v1160, %v1163
        %v1165 = vrot.slane %v1164, 4
        %v1167 = vshll.u32 %v1071, 16
        %v1169 = vrot.slane %v1167, 5
        %v1170 = vsel %vm885, %v1165, %v1169
        %v1172 = vshrl.u32 %v1064, 16
        %v1174 = vrot.slane %v1172, 4
        %v1175 = vshll.u32 %v1064, 16
        %v1177 = vrot.slane %v1175, 5
        %v1178 = vor.u32 %v1174, %v1177
        %v1179 = vrot.slane %v1178, 4
        %v1181 = vshll.u32 %v1072, 16
        %v1183 = vrot.slane %v1181, 5
        %v1184 = vsel %vm885, %v1179, %v1183
        %v1185 = vld [vmem:[%s746] sm:$0xe]
        %v1186 = vld [vmem:[%s746 + $0x8] sm:$0xe]
        %v1187 = vld [vmem:[%s746 + $0x10] sm:$0xe]
        %v1188 = vld [vmem:[%s746 + $0x18] sm:$0xe]
        %v1189 = vld [vmem:[%s746 + $0x20] sm:$0xe]
        %v1190 = vld [vmem:[%s746 + $0x28] sm:$0xe]
        %v1191 = vld [vmem:[%s746 + $0x30] sm:$0xe]
        %v1192 = vld [vmem:[%s746 + $0x38] sm:$0xe]
        %v1209 = vrot.slane %v1185, 5
        %v1210 = vrot.slane %v1209, 4
        %v1211 = vrot.slane %v1065, 5
        %v1212 = vsel %vm1024, %v1210, %v1211
        %v1213 = vrot.slane %v1186, 5
        %v1214 = vrot.slane %v1213, 4
        %v1215 = vrot.slane %v1066, 5
        %v1216 = vsel %vm1024, %v1214, %v1215
        %v1217 = vrot.slane %v1187, 5
        %v1218 = vrot.slane %v1217, 4
        %v1219 = vrot.slane %v1067, 5
        %v1220 = vsel %vm1024, %v1218, %v1219
        %v1221 = vrot.slane %v1188, 5
        %v1222 = vrot.slane %v1221, 4
        %v1223 = vrot.slane %v1068, 5
        %v1224 = vsel %vm1024, %v1222, %v1223
        %v1225 = vrot.slane %v1189, 5
        %v1226 = vrot.slane %v1225, 4
        %v1227 = vrot.slane %v1069, 5
        %v1228 = vsel %vm1024, %v1226, %v1227
        %v1229 = vrot.slane %v1190, 5
        %v1230 = vrot.slane %v1229, 4
        %v1231 = vrot.slane %v1070, 5
        %v1232 = vsel %vm1024, %v1230, %v1231
        %v1233 = vrot.slane %v1191, 5
        %v1234 = vrot.slane %v1233, 4
        %v1235 = vrot.slane %v1071, 5
        %v1236 = vsel %vm1024, %v1234, %v1235
        %v1237 = vrot.slane %v1192, 5
        %v1238 = vrot.slane %v1237, 4
        %v1239 = vrot.slane %v1072, 5
        %v1240 = vsel %vm1024, %v1238, %v1239
        %s1241 = scalar_lea.vmem [#allocation2], 16
        %v1242 = vld [vmem:[%s1241] sm:$0xf]
        %v1243 = vld [vmem:[%s1241 + $0x8] sm:$0xf]
        %v1244 = vld [vmem:[%s1241 + $0x10] sm:$0xf]
        %v1245 = vld [vmem:[%s1241 + $0x18] sm:$0xf]
        %v1246 = vld [vmem:[%s1241 + $0x20] sm:$0xf]
        %v1247 = vld [vmem:[%s1241 + $0x28] sm:$0xf]
        %v1248 = vld [vmem:[%s1241 + $0x30] sm:$0xf]
        %v1249 = vld [vmem:[%s1241 + $0x38] sm:$0xf]
        %v1250 = vld [vmem:[%s1241 + $0x4] sm:$0x1]
        %v1251 = vld [vmem:[%s1241 + $0xc] sm:$0x1]
        %v1252 = vld [vmem:[%s1241 + $0x14] sm:$0x1]
        %v1253 = vld [vmem:[%s1241 + $0x1c] sm:$0x1]
        %v1254 = vld [vmem:[%s1241 + $0x24] sm:$0x1]
        %v1255 = vld [vmem:[%s1241 + $0x2c] sm:$0x1]
        %v1256 = vld [vmem:[%s1241 + $0x34] sm:$0x1]
        %v1257 = vld [vmem:[%s1241 + $0x3c] sm:$0x1]
        %v1259 = vshrl.u32 %v1242, 16
        %v1261 = vrot.slane %v1259, 4
        %v1262 = vshll.u32 %v1242, 16
        %v1264 = vrot.slane %v1262, 5
        %v1265 = vor.u32 %v1261, %v1264
        %v1266 = vrot.slane %v1265, 4
        %v1268 = vshll.u32 %v1250, 16
        %v1270 = vrot.slane %v1268, 5
        %v1271 = vsel %vm885, %v1266, %v1270
        %v1273 = vshrl.u32 %v1243, 16
        %v1275 = vrot.slane %v1273, 4
        %v1276 = vshll.u32 %v1243, 16
        %v1278 = vrot.slane %v1276, 5
        %v1279 = vor.u32 %v1275, %v1278
        %v1280 = vrot.slane %v1279, 4
        %v1282 = vshll.u32 %v1251, 16
        %v1284 = vrot.slane %v1282, 5
        %v1285 = vsel %vm885, %v1280, %v1284
        %v1287 = vshrl.u32 %v1244, 16
        %v1289 = vrot.slane %v1287, 4
        %v1290 = vshll.u32 %v1244, 16
        %v1292 = vrot.slane %v1290, 5
        %v1293 = vor.u32 %v1289, %v1292
        %v1294 = vrot.slane %v1293, 4
        %v1296 = vshll.u32 %v1252, 16
        %v1298 = vrot.slane %v1296, 5
        %v1299 = vsel %vm885, %v1294, %v1298
        %v1301 = vshrl.u32 %v1245, 16
        %v1303 = vrot.slane %v1301, 4
        %v1304 = vshll.u32 %v1245, 16
        %v1306 = vrot.slane %v1304, 5
        %v1307 = vor.u32 %v1303, %v1306
        %v1308 = vrot.slane %v1307, 4
        %v1310 = vshll.u32 %v1253, 16
        %v1312 = vrot.slane %v1310, 5
        %v1313 = vsel %vm885, %v1308, %v1312
        %v1315 = vshrl.u32 %v1246, 16
        %v1317 = vrot.slane %v1315, 4
        %v1318 = vshll.u32 %v1246, 16
        %v1320 = vrot.slane %v1318, 5
        %v1321 = vor.u32 %v1317, %v1320
        %v1322 = vrot.slane %v1321, 4
        %v1324 = vshll.u32 %v1254, 16
        %v1326 = vrot.slane %v1324, 5
        %v1327 = vsel %vm885, %v1322, %v1326
        %v1329 = vshrl.u32 %v1247, 16
        %v1331 = vrot.slane %v1329, 4
        %v1332 = vshll.u32 %v1247, 16
        %v1334 = vrot.slane %v1332, 5
        %v1335 = vor.u32 %v1331, %v1334
        %v1336 = vrot.slane %v1335, 4
        %v1338 = vshll.u32 %v1255, 16
        %v1340 = vrot.slane %v1338, 5
        %v1341 = vsel %vm885, %v1336, %v1340
        %v1343 = vshrl.u32 %v1248, 16
        %v1345 = vrot.slane %v1343, 4
        %v1346 = vshll.u32 %v1248, 16
        %v1348 = vrot.slane %v1346, 5
        %v1349 = vor.u32 %v1345, %v1348
        %v1350 = vrot.slane %v1349, 4
        %v1352 = vshll.u32 %v1256, 16
        %v1354 = vrot.slane %v1352, 5
        %v1355 = vsel %vm885, %v1350, %v1354
        %v1357 = vshrl.u32 %v1249, 16
        %v1359 = vrot.slane %v1357, 4
        %v1360 = vshll.u32 %v1249, 16
        %v1362 = vrot.slane %v1360, 5
        %v1363 = vor.u32 %v1359, %v1362
        %v1364 = vrot.slane %v1363, 4
        %v1366 = vshll.u32 %v1257, 16
        %v1368 = vrot.slane %v1366, 5
        %v1369 = vsel %vm885, %v1364, %v1368
        %v1370 = vld [vmem:[%s1241] sm:$0xe]
        %v1371 = vld [vmem:[%s1241 + $0x8] sm:$0xe]
        %v1372 = vld [vmem:[%s1241 + $0x10] sm:$0xe]
        %v1373 = vld [vmem:[%s1241 + $0x18] sm:$0xe]
        %v1374 = vld [vmem:[%s1241 + $0x20] sm:$0xe]
        %v1375 = vld [vmem:[%s1241 + $0x28] sm:$0xe]
        %v1376 = vld [vmem:[%s1241 + $0x30] sm:$0xe]
        %v1377 = vld [vmem:[%s1241 + $0x38] sm:$0xe]
        %v1394 = vrot.slane %v1370, 5
        %v1395 = vrot.slane %v1394, 4
        %v1396 = vrot.slane %v1250, 5
        %v1397 = vsel %vm1024, %v1395, %v1396
        %v1398 = vrot.slane %v1371, 5
        %v1399 = vrot.slane %v1398, 4
        %v1400 = vrot.slane %v1251, 5
        %v1401 = vsel %vm1024, %v1399, %v1400
        %v1402 = vrot.slane %v1372, 5
        %v1403 = vrot.slane %v1402, 4
        %v1404 = vrot.slane %v1252, 5
        %v1405 = vsel %vm1024, %v1403, %v1404
        %v1406 = vrot.slane %v1373, 5
        %v1407 = vrot.slane %v1406, 4
        %v1408 = vrot.slane %v1253, 5
        %v1409 = vsel %vm1024, %v1407, %v1408
        %v1410 = vrot.slane %v1374, 5
        %v1411 = vrot.slane %v1410, 4
        %v1412 = vrot.slane %v1254, 5
        %v1413 = vsel %vm1024, %v1411, %v1412
        %v1414 = vrot.slane %v1375, 5
        %v1415 = vrot.slane %v1414, 4
        %v1416 = vrot.slane %v1255, 5
        %v1417 = vsel %vm1024, %v1415, %v1416
        %v1418 = vrot.slane %v1376, 5
        %v1419 = vrot.slane %v1418, 4
        %v1420 = vrot.slane %v1256, 5
        %v1421 = vsel %vm1024, %v1419, %v1420
        %v1422 = vrot.slane %v1377, 5
        %v1423 = vrot.slane %v1422, 4
        %v1424 = vrot.slane %v1257, 5
        %v1425 = vsel %vm1024, %v1423, %v1424
        %v1434 = vunpack.c.l.b16 %v867
        %v1435 = vunpack.c.l.b16 %v868
        %v1436 = vunpack.c.l.b16 %v869
        %v1437 = vunpack.c.l.b16 %v870
        %v1438 = vunpack.c.l.b16 %v871
        %v1439 = vunpack.c.l.b16 %v872
        %v1440 = vunpack.c.l.b16 %v873
        %v1441 = vunpack.c.l.b16 %v874
        %v1442 = vpack.c.b16 %v1435, %v1434
        %v1443 = vpack.c.b16 %v1437, %v1436
        %v1444 = vpack.c.b16 %v1439, %v1438
        %v1445 = vpack.c.b16 %v1441, %v1440
        %v1450 = vunpack.c.l.b16 %v899
        %v1451 = vunpack.c.l.b16 %v913
        %v1452 = vunpack.c.l.b16 %v927
        %v1453 = vunpack.c.l.b16 %v941
        %v1454 = vunpack.c.l.b16 %v955
        %v1455 = vunpack.c.l.b16 %v969
        %v1456 = vunpack.c.l.b16 %v983
        %v1457 = vunpack.c.l.b16 %v997
        %v1458 = vpack.c.b16 %v1451, %v1450
        %v1459 = vpack.c.b16 %v1453, %v1452
        %v1460 = vpack.c.b16 %v1455, %v1454
        %v1461 = vpack.c.b16 %v1457, %v1456
        %v1466 = vunpack.c.l.b16 %v1028
        %v1467 = vunpack.c.l.b16 %v1032
        %v1468 = vunpack.c.l.b16 %v1036
        %v1469 = vunpack.c.l.b16 %v1040
        %v1470 = vunpack.c.l.b16 %v1044
        %v1471 = vunpack.c.l.b16 %v1048
        %v1472 = vunpack.c.l.b16 %v1052
        %v1473 = vunpack.c.l.b16 %v1056
        %v1474 = vpack.c.b16 %v1467, %v1466
        %v1475 = vpack.c.b16 %v1469, %v1468
        %v1476 = vpack.c.b16 %v1471, %v1470
        %v1477 = vpack.c.b16 %v1473, %v1472
        %v1490 = vunpack.c.l.b16 %v1057
        %v1491 = vunpack.c.l.b16 %v1058
        %v1492 = vunpack.c.l.b16 %v1059
        %v1493 = vunpack.c.l.b16 %v1060
        %v1494 = vunpack.c.l.b16 %v1061
        %v1495 = vunpack.c.l.b16 %v1062
        %v1496 = vunpack.c.l.b16 %v1063
        %v1497 = vunpack.c.l.b16 %v1064
        %v1498 = vpack.c.b16 %v1491, %v1490
        %v1499 = vpack.c.b16 %v1493, %v1492
        %v1500 = vpack.c.b16 %v1495, %v1494
        %v1501 = vpack.c.b16 %v1497, %v1496
        %v1506 = vunpack.c.l.b16 %v1086
        %v1507 = vunpack.c.l.b16 %v1100
        %v1508 = vunpack.c.l.b16 %v1114
        %v1509 = vunpack.c.l.b16 %v1128
        %v1510 = vunpack.c.l.b16 %v1142
        %v1511 = vunpack.c.l.b16 %v1156
        %v1512 = vunpack.c.l.b16 %v1170
        %v1513 = vunpack.c.l.b16 %v1184
        %v1514 = vpack.c.b16 %v1507, %v1506
        %v1515 = vpack.c.b16 %v1509, %v1508
        %v1516 = vpack.c.b16 %v1511, %v1510
        %v1517 = vpack.c.b16 %v1513, %v1512
        %v1522 = vunpack.c.l.b16 %v1212
        %v1523 = vunpack.c.l.b16 %v1216
        %v1524 = vunpack.c.l.b16 %v1220
        %v1525 = vunpack.c.l.b16 %v1224
        %v1526 = vunpack.c.l.b16 %v1228
        %v1527 = vunpack.c.l.b16 %v1232
        %v1528 = vunpack.c.l.b16 %v1236
        %v1529 = vunpack.c.l.b16 %v1240
        %v1530 = vpack.c.b16 %v1523, %v1522
        %v1531 = vpack.c.b16 %v1525, %v1524
        %v1532 = vpack.c.b16 %v1527, %v1526
        %v1533 = vpack.c.b16 %v1529, %v1528
        %v1546 = vunpack.c.l.b16 %v1242
        %v1547 = vunpack.c.l.b16 %v1243
        %v1548 = vunpack.c.l.b16 %v1244
        %v1549 = vunpack.c.l.b16 %v1245
        %v1550 = vunpack.c.l.b16 %v1246
        %v1551 = vunpack.c.l.b16 %v1247
        %v1552 = vunpack.c.l.b16 %v1248
        %v1553 = vunpack.c.l.b16 %v1249
        %v1554 = vpack.c.b16 %v1547, %v1546
        %v1555 = vpack.c.b16 %v1549, %v1548
        %v1556 = vpack.c.b16 %v1551, %v1550
        %v1557 = vpack.c.b16 %v1553, %v1552
        %v1562 = vunpack.c.l.b16 %v1271
        %v1563 = vunpack.c.l.b16 %v1285
        %v1564 = vunpack.c.l.b16 %v1299
        %v1565 = vunpack.c.l.b16 %v1313
        %v1566 = vunpack.c.l.b16 %v1327
        %v1567 = vunpack.c.l.b16 %v1341
        %v1568 = vunpack.c.l.b16 %v1355
        %v1569 = vunpack.c.l.b16 %v1369
        %v1570 = vpack.c.b16 %v1563, %v1562
        %v1571 = vpack.c.b16 %v1565, %v1564
        %v1572 = vpack.c.b16 %v1567, %v1566
        %v1573 = vpack.c.b16 %v1569, %v1568
        %v1578 = vunpack.c.l.b16 %v1397
        %v1579 = vunpack.c.l.b16 %v1401
        %v1580 = vunpack.c.l.b16 %v1405
        %v1581 = vunpack.c.l.b16 %v1409
        %v1582 = vunpack.c.l.b16 %v1413
        %v1583 = vunpack.c.l.b16 %v1417
        %v1584 = vunpack.c.l.b16 %v1421
        %v1585 = vunpack.c.l.b16 %v1425
        %v1586 = vpack.c.b16 %v1579, %v1578
        %v1587 = vpack.c.b16 %v1581, %v1580
        %v1588 = vpack.c.b16 %v1583, %v1582
        %v1589 = vpack.c.b16 %v1585, %v1584
        %v1594 = vld [vmem:[#allocation6] sm:$0xf]
        %v1595 = vld [vmem:[#allocation6 + $0x4] sm:$0xf]
        %v1596 = vld [vmem:[#allocation6 + $0x8] sm:$0xf]
        %v1597 = vld [vmem:[#allocation6 + $0xc] sm:$0xf]
        %v1598 = vld [vmem:[#allocation6 + $0x10] sm:$0xf]
        %v1599 = vld [vmem:[#allocation6 + $0x14] sm:$0xf]
        %v1600 = vld [vmem:[#allocation6 + $0x18] sm:$0xf]
        %v1601 = vld [vmem:[#allocation6 + $0x1c] sm:$0xf]
        %v1602 = vld [vmem:[#allocation6 + $0x20] sm:$0xf]
        %v1603 = vld [vmem:[#allocation6 + $0x24] sm:$0xf]
        %v1604 = vld [vmem:[#allocation6 + $0x28] sm:$0xf]
        %v1605 = vld [vmem:[#allocation6 + $0x2c] sm:$0xf]
        %v1606 = vld [vmem:[#allocation6 + $0x30] sm:$0xf]
        %v1607 = vld [vmem:[#allocation6 + $0x34] sm:$0xf]
        %v1608 = vld [vmem:[#allocation6 + $0x38] sm:$0xf]
        %v1609 = vld [vmem:[#allocation6 + $0x3c] sm:$0xf]
        %v1610 = vld [vmem:[#allocation6 + $0x40] sm:$0xf]
        %v1611 = vld [vmem:[#allocation6 + $0x44] sm:$0xf]
        %v1612 = vld [vmem:[#allocation6 + $0x48] sm:$0xf]
        %v1613 = vld [vmem:[#allocation6 + $0x4c] sm:$0xf]
        %v1614 = vld [vmem:[#allocation6 + $0x50] sm:$0xf]
        %v1615 = vld [vmem:[#allocation6 + $0x54] sm:$0xf]
        %v1616 = vld [vmem:[#allocation6 + $0x58] sm:$0xf]
        %v1617 = vld [vmem:[#allocation6 + $0x5c] sm:$0xf]
        %v1618 = vld [vmem:[#allocation6 + $0x60] sm:$0xf]
        %v1619 = vld [vmem:[#allocation6 + $0x64] sm:$0xf]
        %v1620 = vld [vmem:[#allocation6 + $0x68] sm:$0xf]
        %v1621 = vld [vmem:[#allocation6 + $0x6c] sm:$0xf]
        %v1622 = vld [vmem:[#allocation6 + $0x70] sm:$0xf]
        %v1623 = vld [vmem:[#allocation6 + $0x74] sm:$0xf]
        %v1624 = vld [vmem:[#allocation6 + $0x78] sm:$0xf]
        %v1625 = vld [vmem:[#allocation6 + $0x7c] sm:$0xf]
        %v1626 = vld [vmem:[#allocation6 + $0x80] sm:$0xf]
        %v1627 = vld [vmem:[#allocation6 + $0x84] sm:$0xf]
        %v1628 = vld [vmem:[#allocation6 + $0x88] sm:$0xf]
        %v1629 = vld [vmem:[#allocation6 + $0x8c] sm:$0xf]
        %v1630 = vld [vmem:[#allocation6 + $0x90] sm:$0xf]
        %v1631 = vld [vmem:[#allocation6 + $0x94] sm:$0xf]
        %v1632 = vld [vmem:[#allocation6 + $0x98] sm:$0xf]
        %v1633 = vld [vmem:[#allocation6 + $0x9c] sm:$0xf]
        %v1634 = vld [vmem:[#allocation6 + $0xa0] sm:$0xf]
        %v1635 = vld [vmem:[#allocation6 + $0xa4] sm:$0xf]
        %v1636 = vld [vmem:[#allocation6 + $0xa8] sm:$0xf]
        %v1637 = vld [vmem:[#allocation6 + $0xac] sm:$0xf]
        %v1638 = vld [vmem:[#allocation6 + $0xb0] sm:$0xf]
        %v1639 = vld [vmem:[#allocation6 + $0xb4] sm:$0xf]
        %v1640 = vld [vmem:[#allocation6 + $0xb8] sm:$0xf]
        %v1641 = vld [vmem:[#allocation6 + $0xbc] sm:$0xf]
        %v1642 = vld [vmem:[#allocation6 + $0xc0] sm:$0xf]
        %v1643 = vld [vmem:[#allocation6 + $0xc4] sm:$0xf]
        %v1644 = vld [vmem:[#allocation6 + $0xc8] sm:$0xf]
        %v1645 = vld [vmem:[#allocation6 + $0xcc] sm:$0xf]
        %v1646 = vld [vmem:[#allocation6 + $0xd0] sm:$0xf]
        %v1647 = vld [vmem:[#allocation6 + $0xd4] sm:$0xf]
        %v1648 = vld [vmem:[#allocation6 + $0xd8] sm:$0xf]
        %v1649 = vld [vmem:[#allocation6 + $0xdc] sm:$0xf]
        %v1650 = vld [vmem:[#allocation6 + $0xe0] sm:$0xf]
        %v1651 = vld [vmem:[#allocation6 + $0xe4] sm:$0xf]
        %v1652 = vld [vmem:[#allocation6 + $0xe8] sm:$0xf]
        %v1653 = vld [vmem:[#allocation6 + $0xec] sm:$0xf]
        %v1654 = vld [vmem:[#allocation6 + $0xf0] sm:$0xf]
        %v1655 = vld [vmem:[#allocation6 + $0xf4] sm:$0xf]
        %v1656 = vld [vmem:[#allocation6 + $0xf8] sm:$0xf]
        %v1657 = vld [vmem:[#allocation6 + $0xfc] sm:$0xf]
        %v1658 = vld [vmem:[#allocation6 + $0x100] sm:$0xf]
        %v1659 = vld [vmem:[#allocation6 + $0x104] sm:$0xf]
        %v1660 = vld [vmem:[#allocation6 + $0x108] sm:$0xf]
        %v1661 = vld [vmem:[#allocation6 + $0x10c] sm:$0xf]
        %v1662 = vld [vmem:[#allocation6 + $0x110] sm:$0xf]
        %v1663 = vld [vmem:[#allocation6 + $0x114] sm:$0xf]
        %v1664 = vld [vmem:[#allocation6 + $0x118] sm:$0xf]
        %v1665 = vld [vmem:[#allocation6 + $0x11c] sm:$0xf]
        %v1666 = vld [vmem:[#allocation6 + $0x120] sm:$0xf]
        %v1667 = vld [vmem:[#allocation6 + $0x124] sm:$0xf]
        %v1668 = vld [vmem:[#allocation6 + $0x128] sm:$0xf]
        %v1669 = vld [vmem:[#allocation6 + $0x12c] sm:$0xf]
        %v1670 = vld [vmem:[#allocation6 + $0x130] sm:$0xf]
        %v1671 = vld [vmem:[#allocation6 + $0x134] sm:$0xf]
        %v1672 = vld [vmem:[#allocation6 + $0x138] sm:$0xf]
        %v1673 = vld [vmem:[#allocation6 + $0x13c] sm:$0xf]
        %v1674 = vld [vmem:[#allocation6 + $0x140] sm:$0xf]
        %v1675 = vld [vmem:[#allocation6 + $0x144] sm:$0xf]
        %v1676 = vld [vmem:[#allocation6 + $0x148] sm:$0xf]
        %v1677 = vld [vmem:[#allocation6 + $0x14c] sm:$0xf]
        %v1678 = vld [vmem:[#allocation6 + $0x150] sm:$0xf]
        %v1679 = vld [vmem:[#allocation6 + $0x154] sm:$0xf]
        %v1680 = vld [vmem:[#allocation6 + $0x158] sm:$0xf]
        %v1681 = vld [vmem:[#allocation6 + $0x15c] sm:$0xf]
        %v1682 = vld [vmem:[#allocation6 + $0x160] sm:$0xf]
        %v1683 = vld [vmem:[#allocation6 + $0x164] sm:$0xf]
        %v1684 = vld [vmem:[#allocation6 + $0x168] sm:$0xf]
        %v1685 = vld [vmem:[#allocation6 + $0x16c] sm:$0xf]
        %v1686 = vld [vmem:[#allocation6 + $0x170] sm:$0xf]
        %v1687 = vld [vmem:[#allocation6 + $0x174] sm:$0xf]
        %v1688 = vld [vmem:[#allocation6 + $0x178] sm:$0xf]
        %v1689 = vld [vmem:[#allocation6 + $0x17c] sm:$0xf]
        %v1690 = vld [vmem:[#allocation6 + $0x180] sm:$0xf]
        %v1691 = vld [vmem:[#allocation6 + $0x184] sm:$0xf]
        %v1692 = vld [vmem:[#allocation6 + $0x188] sm:$0xf]
        %v1693 = vld [vmem:[#allocation6 + $0x18c] sm:$0xf]
        %v1694 = vld [vmem:[#allocation6 + $0x190] sm:$0xf]
        %v1695 = vld [vmem:[#allocation6 + $0x194] sm:$0xf]
        %v1696 = vld [vmem:[#allocation6 + $0x198] sm:$0xf]
        %v1697 = vld [vmem:[#allocation6 + $0x19c] sm:$0xf]
        %v1698 = vld [vmem:[#allocation6 + $0x1a0] sm:$0xf]
        %v1699 = vld [vmem:[#allocation6 + $0x1a4] sm:$0xf]
        %v1700 = vld [vmem:[#allocation6 + $0x1a8] sm:$0xf]
        %v1701 = vld [vmem:[#allocation6 + $0x1ac] sm:$0xf]
        %v1702 = vld [vmem:[#allocation6 + $0x1b0] sm:$0xf]
        %v1703 = vld [vmem:[#allocation6 + $0x1b4] sm:$0xf]
        %v1704 = vld [vmem:[#allocation6 + $0x1b8] sm:$0xf]
        %v1705 = vld [vmem:[#allocation6 + $0x1bc] sm:$0xf]
        %v1706 = vld [vmem:[#allocation6 + $0x1c0] sm:$0xf]
        %v1707 = vld [vmem:[#allocation6 + $0x1c4] sm:$0xf]
        %v1708 = vld [vmem:[#allocation6 + $0x1c8] sm:$0xf]
        %v1709 = vld [vmem:[#allocation6 + $0x1cc] sm:$0xf]
        %v1710 = vld [vmem:[#allocation6 + $0x1d0] sm:$0xf]
        %v1711 = vld [vmem:[#allocation6 + $0x1d4] sm:$0xf]
        %v1712 = vld [vmem:[#allocation6 + $0x1d8] sm:$0xf]
        %v1713 = vld [vmem:[#allocation6 + $0x1dc] sm:$0xf]
        %v1714 = vld [vmem:[#allocation6 + $0x1e0] sm:$0xf]
        %v1715 = vld [vmem:[#allocation6 + $0x1e4] sm:$0xf]
        %v1716 = vld [vmem:[#allocation6 + $0x1e8] sm:$0xf]
        %v1717 = vld [vmem:[#allocation6 + $0x1ec] sm:$0xf]
        %v1718 = vld [vmem:[#allocation6 + $0x1f0] sm:$0xf]
        %v1719 = vld [vmem:[#allocation6 + $0x1f4] sm:$0xf]
        %v1720 = vld [vmem:[#allocation6 + $0x1f8] sm:$0xf]
        %v1721 = vld [vmem:[#allocation6 + $0x1fc] sm:$0xf]
        %v1722 = vld [vmem:[#allocation6 + $0x200] sm:$0xf]
        %v1723 = vld [vmem:[#allocation6 + $0x204] sm:$0xf]
        %v1724 = vld [vmem:[#allocation6 + $0x208] sm:$0xf]
        %v1725 = vld [vmem:[#allocation6 + $0x20c] sm:$0xf]
        %v1726 = vld [vmem:[#allocation6 + $0x210] sm:$0xf]
        %v1727 = vld [vmem:[#allocation6 + $0x214] sm:$0xf]
        %v1728 = vld [vmem:[#allocation6 + $0x218] sm:$0xf]
        %v1729 = vld [vmem:[#allocation6 + $0x21c] sm:$0xf]
        %v1730 = vld [vmem:[#allocation6 + $0x220] sm:$0xf]
        %v1731 = vld [vmem:[#allocation6 + $0x224] sm:$0xf]
        %v1732 = vld [vmem:[#allocation6 + $0x228] sm:$0xf]
        %v1733 = vld [vmem:[#allocation6 + $0x22c] sm:$0xf]
        %v1734 = vld [vmem:[#allocation6 + $0x230] sm:$0xf]
        %v1735 = vld [vmem:[#allocation6 + $0x234] sm:$0xf]
        %v1736 = vld [vmem:[#allocation6 + $0x238] sm:$0xf]
        %v1737 = vld [vmem:[#allocation6 + $0x23c] sm:$0xf]
        %v1738 = vld [vmem:[%s4] sm:$0x1]
        %v1740 = vperm.slane %v1738, 0
        %v1886 = vunpack.c.l.b16 %v1594
        %v1887 = vunpack.c.l.b16 %v1595
        %v1888 = vunpack.c.l.b16 %v1596
        %v1889 = vunpack.c.l.b16 %v1597
        %v1890 = vunpack.c.l.b16 %v1598
        %v1891 = vunpack.c.l.b16 %v1599
        %v1892 = vunpack.c.l.b16 %v1600
        %v1893 = vunpack.c.l.b16 %v1601
        %v1894 = vunpack.c.l.b16 %v1602
        %v1895 = vunpack.c.l.b16 %v1603
        %v1896 = vunpack.c.l.b16 %v1604
        %v1897 = vunpack.c.l.b16 %v1605
        %v1898 = vunpack.c.l.b16 %v1606
        %v1899 = vunpack.c.l.b16 %v1607
        %v1900 = vunpack.c.l.b16 %v1608
        %v1901 = vunpack.c.l.b16 %v1609
        %v1902 = vunpack.c.l.b16 %v1610
        %v1903 = vunpack.c.l.b16 %v1611
        %v1904 = vunpack.c.l.b16 %v1612
        %v1905 = vunpack.c.l.b16 %v1613
        %v1906 = vunpack.c.l.b16 %v1614
        %v1907 = vunpack.c.l.b16 %v1615
        %v1908 = vunpack.c.l.b16 %v1616
        %v1909 = vunpack.c.l.b16 %v1617
        %v1910 = vunpack.c.l.b16 %v1618
        %v1911 = vunpack.c.l.b16 %v1619
        %v1912 = vunpack.c.l.b16 %v1620
        %v1913 = vunpack.c.l.b16 %v1621
        %v1914 = vunpack.c.l.b16 %v1622
        %v1915 = vunpack.c.l.b16 %v1623
        %v1916 = vunpack.c.l.b16 %v1624
        %v1917 = vunpack.c.l.b16 %v1625
        %v1918 = vunpack.c.l.b16 %v1626
        %v1919 = vunpack.c.l.b16 %v1627
        %v1920 = vunpack.c.l.b16 %v1628
        %v1921 = vunpack.c.l.b16 %v1629
        %v1922 = vunpack.c.l.b16 %v1630
        %v1923 = vunpack.c.l.b16 %v1631
        %v1924 = vunpack.c.l.b16 %v1632
        %v1925 = vunpack.c.l.b16 %v1633
        %v1926 = vunpack.c.l.b16 %v1634
        %v1927 = vunpack.c.l.b16 %v1635
        %v1928 = vunpack.c.l.b16 %v1636
        %v1929 = vunpack.c.l.b16 %v1637
        %v1930 = vunpack.c.l.b16 %v1638
        %v1931 = vunpack.c.l.b16 %v1639
        %v1932 = vunpack.c.l.b16 %v1640
        %v1933 = vunpack.c.l.b16 %v1641
        %v1934 = vunpack.c.l.b16 %v1642
        %v1935 = vunpack.c.l.b16 %v1643
        %v1936 = vunpack.c.l.b16 %v1644
        %v1937 = vunpack.c.l.b16 %v1645
        %v1938 = vunpack.c.l.b16 %v1646
        %v1939 = vunpack.c.l.b16 %v1647
        %v1940 = vunpack.c.l.b16 %v1648
        %v1941 = vunpack.c.l.b16 %v1649
        %v1942 = vunpack.c.l.b16 %v1650
        %v1943 = vunpack.c.l.b16 %v1651
        %v1944 = vunpack.c.l.b16 %v1652
        %v1945 = vunpack.c.l.b16 %v1653
        %v1946 = vunpack.c.l.b16 %v1654
        %v1947 = vunpack.c.l.b16 %v1655
        %v1948 = vunpack.c.l.b16 %v1656
        %v1949 = vunpack.c.l.b16 %v1657
        %v1950 = vunpack.c.l.b16 %v1658
        %v1951 = vunpack.c.l.b16 %v1659
        %v1952 = vunpack.c.l.b16 %v1660
        %v1953 = vunpack.c.l.b16 %v1661
        %v1954 = vunpack.c.l.b16 %v1662
        %v1955 = vunpack.c.l.b16 %v1663
        %v1956 = vunpack.c.l.b16 %v1664
        %v1957 = vunpack.c.l.b16 %v1665
        %v1958 = vunpack.c.l.b16 %v1666
        %v1959 = vunpack.c.l.b16 %v1667
        %v1960 = vunpack.c.l.b16 %v1668
        %v1961 = vunpack.c.l.b16 %v1669
        %v1962 = vunpack.c.l.b16 %v1670
        %v1963 = vunpack.c.l.b16 %v1671
        %v1964 = vunpack.c.l.b16 %v1672
        %v1965 = vunpack.c.l.b16 %v1673
        %v1966 = vunpack.c.l.b16 %v1674
        %v1967 = vunpack.c.l.b16 %v1675
        %v1968 = vunpack.c.l.b16 %v1676
        %v1969 = vunpack.c.l.b16 %v1677
        %v1970 = vunpack.c.l.b16 %v1678
        %v1971 = vunpack.c.l.b16 %v1679
        %v1972 = vunpack.c.l.b16 %v1680
        %v1973 = vunpack.c.l.b16 %v1681
        %v1974 = vunpack.c.l.b16 %v1682
        %v1975 = vunpack.c.l.b16 %v1683
        %v1976 = vunpack.c.l.b16 %v1684
        %v1977 = vunpack.c.l.b16 %v1685
        %v1978 = vunpack.c.l.b16 %v1686
        %v1979 = vunpack.c.l.b16 %v1687
        %v1980 = vunpack.c.l.b16 %v1688
        %v1981 = vunpack.c.l.b16 %v1689
        %v1982 = vunpack.c.l.b16 %v1690
        %v1983 = vunpack.c.l.b16 %v1691
        %v1984 = vunpack.c.l.b16 %v1692
        %v1985 = vunpack.c.l.b16 %v1693
        %v1986 = vunpack.c.l.b16 %v1694
        %v1987 = vunpack.c.l.b16 %v1695
        %v1988 = vunpack.c.l.b16 %v1696
        %v1989 = vunpack.c.l.b16 %v1697
        %v1990 = vunpack.c.l.b16 %v1698
        %v1991 = vunpack.c.l.b16 %v1699
        %v1992 = vunpack.c.l.b16 %v1700
        %v1993 = vunpack.c.l.b16 %v1701
        %v1994 = vunpack.c.l.b16 %v1702
        %v1995 = vunpack.c.l.b16 %v1703
        %v1996 = vunpack.c.l.b16 %v1704
        %v1997 = vunpack.c.l.b16 %v1705
        %v1998 = vunpack.c.l.b16 %v1706
        %v1999 = vunpack.c.l.b16 %v1707
        %v2000 = vunpack.c.l.b16 %v1708
        %v2001 = vunpack.c.l.b16 %v1709
        %v2002 = vunpack.c.l.b16 %v1710
        %v2003 = vunpack.c.l.b16 %v1711
        %v2004 = vunpack.c.l.b16 %v1712
        %v2005 = vunpack.c.l.b16 %v1713
        %v2006 = vunpack.c.l.b16 %v1714
        %v2007 = vunpack.c.l.b16 %v1715
        %v2008 = vunpack.c.l.b16 %v1716
        %v2009 = vunpack.c.l.b16 %v1717
        %v2010 = vunpack.c.l.b16 %v1718
        %v2011 = vunpack.c.l.b16 %v1719
        %v2012 = vunpack.c.l.b16 %v1720
        %v2013 = vunpack.c.l.b16 %v1721
        %v2014 = vunpack.c.l.b16 %v1722
        %v2015 = vunpack.c.l.b16 %v1723
        %v2016 = vunpack.c.l.b16 %v1724
        %v2017 = vunpack.c.l.b16 %v1725
        %v2018 = vunpack.c.l.b16 %v1726
        %v2019 = vunpack.c.l.b16 %v1727
        %v2020 = vunpack.c.l.b16 %v1728
        %v2021 = vunpack.c.l.b16 %v1729
        %v2022 = vunpack.c.l.b16 %v1730
        %v2023 = vunpack.c.l.b16 %v1731
        %v2024 = vunpack.c.l.b16 %v1732
        %v2025 = vunpack.c.l.b16 %v1733
        %v2026 = vunpack.c.l.b16 %v1734
        %v2027 = vunpack.c.l.b16 %v1735
        %v2028 = vunpack.c.l.b16 %v1736
        %v2029 = vunpack.c.l.b16 %v1737
        %v2030 = vpack.c.b16 %v1887, %v1886
        %v2031 = vpack.c.b16 %v1889, %v1888
        %v2032 = vpack.c.b16 %v1891, %v1890
        %v2033 = vpack.c.b16 %v1893, %v1892
        %v2034 = vpack.c.b16 %v1895, %v1894
        %v2035 = vpack.c.b16 %v1897, %v1896
        %v2036 = vpack.c.b16 %v1899, %v1898
        %v2037 = vpack.c.b16 %v1901, %v1900
        %v2038 = vpack.c.b16 %v1903, %v1902
        %v2039 = vpack.c.b16 %v1905, %v1904
        %v2040 = vpack.c.b16 %v1907, %v1906
        %v2041 = vpack.c.b16 %v1909, %v1908
        %v2042 = vpack.c.b16 %v1911, %v1910
        %v2043 = vpack.c.b16 %v1913, %v1912
        %v2044 = vpack.c.b16 %v1915, %v1914
        %v2045 = vpack.c.b16 %v1917, %v1916
        %v2046 = vpack.c.b16 %v1919, %v1918
        %v2047 = vpack.c.b16 %v1921, %v1920
        %v2048 = vpack.c.b16 %v1923, %v1922
        %v2049 = vpack.c.b16 %v1925, %v1924
        %v2050 = vpack.c.b16 %v1927, %v1926
        %v2051 = vpack.c.b16 %v1929, %v1928
        %v2052 = vpack.c.b16 %v1931, %v1930
        %v2053 = vpack.c.b16 %v1933, %v1932
        %v2054 = vpack.c.b16 %v1935, %v1934
        %v2055 = vpack.c.b16 %v1937, %v1936
        %v2056 = vpack.c.b16 %v1939, %v1938
        %v2057 = vpack.c.b16 %v1941, %v1940
        %v2058 = vpack.c.b16 %v1943, %v1942
        %v2059 = vpack.c.b16 %v1945, %v1944
        %v2060 = vpack.c.b16 %v1947, %v1946
        %v2061 = vpack.c.b16 %v1949, %v1948
        %v2062 = vpack.c.b16 %v1951, %v1950
        %v2063 = vpack.c.b16 %v1953, %v1952
        %v2064 = vpack.c.b16 %v1955, %v1954
        %v2065 = vpack.c.b16 %v1957, %v1956
        %v2066 = vpack.c.b16 %v1959, %v1958
        %v2067 = vpack.c.b16 %v1961, %v1960
        %v2068 = vpack.c.b16 %v1963, %v1962
        %v2069 = vpack.c.b16 %v1965, %v1964
        %v2070 = vpack.c.b16 %v1967, %v1966
        %v2071 = vpack.c.b16 %v1969, %v1968
        %v2072 = vpack.c.b16 %v1971, %v1970
        %v2073 = vpack.c.b16 %v1973, %v1972
        %v2074 = vpack.c.b16 %v1975, %v1974
        %v2075 = vpack.c.b16 %v1977, %v1976
        %v2076 = vpack.c.b16 %v1979, %v1978
        %v2077 = vpack.c.b16 %v1981, %v1980
        %v2078 = vpack.c.b16 %v1983, %v1982
        %v2079 = vpack.c.b16 %v1985, %v1984
        %v2080 = vpack.c.b16 %v1987, %v1986
        %v2081 = vpack.c.b16 %v1989, %v1988
        %v2082 = vpack.c.b16 %v1991, %v1990
        %v2083 = vpack.c.b16 %v1993, %v1992
        %v2084 = vpack.c.b16 %v1995, %v1994
        %v2085 = vpack.c.b16 %v1997, %v1996
        %v2086 = vpack.c.b16 %v1999, %v1998
        %v2087 = vpack.c.b16 %v2001, %v2000
        %v2088 = vpack.c.b16 %v2003, %v2002
        %v2089 = vpack.c.b16 %v2005, %v2004
        %v2090 = vpack.c.b16 %v2007, %v2006
        %v2091 = vpack.c.b16 %v2009, %v2008
        %v2092 = vpack.c.b16 %v2011, %v2010
        %v2093 = vpack.c.b16 %v2013, %v2012
        %v2094 = vpack.c.b16 %v2015, %v2014
        %v2095 = vpack.c.b16 %v2017, %v2016
        %v2096 = vpack.c.b16 %v2019, %v2018
        %v2097 = vpack.c.b16 %v2021, %v2020
        %v2098 = vpack.c.b16 %v2023, %v2022
        %v2099 = vpack.c.b16 %v2025, %v2024
        %v2100 = vpack.c.b16 %v2027, %v2026
        %v2101 = vpack.c.b16 %v2029, %v2028
        %2174 = vmatpush.bf16.msra.mxu0 %v2037
        %2175 = vmatpush.bf16.msra.mxu0 %v2036
        %2176 = vmatpush.bf16.msra.mxu0 %v2035
        %2177 = vmatpush.bf16.msra.mxu0 %v2034
        %2178 = vmatpush.bf16.msra.mxu0 %v2033
        %2179 = vmatpush.bf16.msra.mxu0 %v2032
        %2180 = vmatpush.bf16.msra.mxu0 %v2031
        %2181 = vmatpush.bf16.msra.mxu0 %v2030
        %2182 = vmatmul.bf16.gmra.mxu0 %v1442
        %v2183 = vpop.f32.mrf.mxu0
        %v2184 = vadd.f32 %v1740, %v2183
        %v2185 = vpop.f32.mrf.mxu0
        %v2186 = vadd.f32 %v1740, %v2185
        %2187 = vmatmul.bf16.gmra.mxu0 %v1443
        %v2188 = vpop.f32.mrf.mxu0
        %v2189 = vadd.f32 %v1740, %v2188
        %v2190 = vpop.f32.mrf.mxu0
        %v2191 = vadd.f32 %v1740, %v2190
        %2192 = vmatmul.bf16.gmra.mxu0 %v1444
        %v2193 = vpop.f32.mrf.mxu0
        %v2194 = vadd.f32 %v1740, %v2193
        %v2195 = vpop.f32.mrf.mxu0
        %v2196 = vadd.f32 %v1740, %v2195
        %2197 = vmatmul.bf16.gmra.mxu0 %v1445
        %v2198 = vpop.f32.mrf.mxu0
        %v2199 = vadd.f32 %v1740, %v2198
        %v2200 = vpop.f32.mrf.mxu0
        %v2201 = vadd.f32 %v1740, %v2200
        %2202 = vdwg.mxu0
        %2203 = vmatpush.bf16.msra.mxu0 %v2045
        %2204 = vmatpush.bf16.msra.mxu0 %v2044
        %2205 = vmatpush.bf16.msra.mxu0 %v2043
        %2206 = vmatpush.bf16.msra.mxu0 %v2042
        %2207 = vmatpush.bf16.msra.mxu0 %v2041
        %2208 = vmatpush.bf16.msra.mxu0 %v2040
        %2209 = vmatpush.bf16.msra.mxu0 %v2039
        %2210 = vmatpush.bf16.msra.mxu0 %v2038
        %2211 = vmatmul.bf16.gmra.mxu0 %v1458
        %v2212 = vpop.f32.mrf.mxu0
        %v2213 = vadd.f32 %v2184, %v2212
        %v2214 = vpop.f32.mrf.mxu0
        %v2215 = vadd.f32 %v2186, %v2214
        %2216 = vmatmul.bf16.gmra.mxu0 %v1459
        %v2217 = vpop.f32.mrf.mxu0
        %v2218 = vadd.f32 %v2189, %v2217
        %v2219 = vpop.f32.mrf.mxu0
        %v2220 = vadd.f32 %v2191, %v2219
        %2221 = vmatmul.bf16.gmra.mxu0 %v1460
        %v2222 = vpop.f32.mrf.mxu0
        %v2223 = vadd.f32 %v2194, %v2222
        %v2224 = vpop.f32.mrf.mxu0
        %v2225 = vadd.f32 %v2196, %v2224
        %2226 = vmatmul.bf16.gmra.mxu0 %v1461
        %v2227 = vpop.f32.mrf.mxu0
        %v2228 = vadd.f32 %v2199, %v2227
        %v2229 = vpop.f32.mrf.mxu0
        %v2230 = vadd.f32 %v2201, %v2229
        %2231 = vdwg.mxu0
        %2232 = vmatpush.bf16.msra.mxu0 %v2053
        %2233 = vmatpush.bf16.msra.mxu0 %v2052
        %2234 = vmatpush.bf16.msra.mxu0 %v2051
        %2235 = vmatpush.bf16.msra.mxu0 %v2050
        %2236 = vmatpush.bf16.msra.mxu0 %v2049
        %2237 = vmatpush.bf16.msra.mxu0 %v2048
        %2238 = vmatpush.bf16.msra.mxu0 %v2047
        %2239 = vmatpush.bf16.msra.mxu0 %v2046
        %2240 = vmatmul.bf16.gmra.mxu0 %v1474
        %v2241 = vpop.f32.mrf.mxu0
        %v2242 = vadd.f32 %v2213, %v2241
        %v2243 = vpop.f32.mrf.mxu0
        %v2244 = vadd.f32 %v2215, %v2243
        %2245 = vmatmul.bf16.gmra.mxu0 %v1475
        %v2246 = vpop.f32.mrf.mxu0
        %v2247 = vadd.f32 %v2218, %v2246
        %v2248 = vpop.f32.mrf.mxu0
        %v2249 = vadd.f32 %v2220, %v2248
        %2250 = vmatmul.bf16.gmra.mxu0 %v1476
        %v2251 = vpop.f32.mrf.mxu0
        %v2252 = vadd.f32 %v2223, %v2251
        %v2253 = vpop.f32.mrf.mxu0
        %v2254 = vadd.f32 %v2225, %v2253
        %2255 = vmatmul.bf16.gmra.mxu0 %v1477
        %v2256 = vpop.f32.mrf.mxu0
        %v2257 = vadd.f32 %v2228, %v2256
        %v2258 = vpop.f32.mrf.mxu0
        %v2259 = vadd.f32 %v2230, %v2258
        %2260 = vdwg.mxu0
        %2261 = vmatpush.bf16.msra.mxu0 %v2061
        %2262 = vmatpush.bf16.msra.mxu0 %v2060
        %2263 = vmatpush.bf16.msra.mxu0 %v2059
        %2264 = vmatpush.bf16.msra.mxu0 %v2058
        %2265 = vmatpush.bf16.msra.mxu0 %v2057
        %2266 = vmatpush.bf16.msra.mxu0 %v2056
        %2267 = vmatpush.bf16.msra.mxu0 %v2055
        %2268 = vmatpush.bf16.msra.mxu0 %v2054
        %2269 = vmatmul.bf16.gmra.mxu0 %v1498
        %v2270 = vpop.f32.mrf.mxu0
        %v2271 = vadd.f32 %v2242, %v2270
        %v2272 = vpop.f32.mrf.mxu0
        %v2273 = vadd.f32 %v2244, %v2272
        %2274 = vmatmul.bf16.gmra.mxu0 %v1499
        %v2275 = vpop.f32.mrf.mxu0
        %v2276 = vadd.f32 %v2247, %v2275
        %v2277 = vpop.f32.mrf.mxu0
        %v2278 = vadd.f32 %v2249, %v2277
        %2279 = vmatmul.bf16.gmra.mxu0 %v1500
        %v2280 = vpop.f32.mrf.mxu0
        %v2281 = vadd.f32 %v2252, %v2280
        %v2282 = vpop.f32.mrf.mxu0
        %v2283 = vadd.f32 %v2254, %v2282
        %2284 = vmatmul.bf16.gmra.mxu0 %v1501
        %v2285 = vpop.f32.mrf.mxu0
        %v2286 = vadd.f32 %v2257, %v2285
        %v2287 = vpop.f32.mrf.mxu0
        %v2288 = vadd.f32 %v2259, %v2287
        %2289 = vdwg.mxu0
        %2290 = vmatpush.bf16.msra.mxu0 %v2069
        %2291 = vmatpush.bf16.msra.mxu0 %v2068
        %2292 = vmatpush.bf16.msra.mxu0 %v2067
        %2293 = vmatpush.bf16.msra.mxu0 %v2066
        %2294 = vmatpush.bf16.msra.mxu0 %v2065
        %2295 = vmatpush.bf16.msra.mxu0 %v2064
        %2296 = vmatpush.bf16.msra.mxu0 %v2063
        %2297 = vmatpush.bf16.msra.mxu0 %v2062
        %2298 = vmatmul.bf16.gmra.mxu0 %v1514
        %v2299 = vpop.f32.mrf.mxu0
        %v2300 = vadd.f32 %v2271, %v2299
        %v2301 = vpop.f32.mrf.mxu0
        %v2302 = vadd.f32 %v2273, %v2301
        %2303 = vmatmul.bf16.gmra.mxu0 %v1515
        %v2304 = vpop.f32.mrf.mxu0
        %v2305 = vadd.f32 %v2276, %v2304
        %v2306 = vpop.f32.mrf.mxu0
        %v2307 = vadd.f32 %v2278, %v2306
        %2308 = vmatmul.bf16.gmra.mxu0 %v1516
        %v2309 = vpop.f32.mrf.mxu0
        %v2310 = vadd.f32 %v2281, %v2309
        %v2311 = vpop.f32.mrf.mxu0
        %v2312 = vadd.f32 %v2283, %v2311
        %2313 = vmatmul.bf16.gmra.mxu0 %v1517
        %v2314 = vpop.f32.mrf.mxu0
        %v2315 = vadd.f32 %v2286, %v2314
        %v2316 = vpop.f32.mrf.mxu0
        %v2317 = vadd.f32 %v2288, %v2316
        %2318 = vdwg.mxu0
        %2319 = vmatpush.bf16.msra.mxu0 %v2077
        %2320 = vmatpush.bf16.msra.mxu0 %v2076
        %2321 = vmatpush.bf16.msra.mxu0 %v2075
        %2322 = vmatpush.bf16.msra.mxu0 %v2074
        %2323 = vmatpush.bf16.msra.mxu0 %v2073
        %2324 = vmatpush.bf16.msra.mxu0 %v2072
        %2325 = vmatpush.bf16.msra.mxu0 %v2071
        %2326 = vmatpush.bf16.msra.mxu0 %v2070
        %2327 = vmatmul.bf16.gmra.mxu0 %v1530
        %v2328 = vpop.f32.mrf.mxu0
        %v2329 = vadd.f32 %v2300, %v2328
        %v2330 = vpop.f32.mrf.mxu0
        %v2331 = vadd.f32 %v2302, %v2330
        %2332 = vmatmul.bf16.gmra.mxu0 %v1531
        %v2333 = vpop.f32.mrf.mxu0
        %v2334 = vadd.f32 %v2305, %v2333
        %v2335 = vpop.f32.mrf.mxu0
        %v2336 = vadd.f32 %v2307, %v2335
        %2337 = vmatmul.bf16.gmra.mxu0 %v1532
        %v2338 = vpop.f32.mrf.mxu0
        %v2339 = vadd.f32 %v2310, %v2338
        %v2340 = vpop.f32.mrf.mxu0
        %v2341 = vadd.f32 %v2312, %v2340
        %2342 = vmatmul.bf16.gmra.mxu0 %v1533
        %v2343 = vpop.f32.mrf.mxu0
        %v2344 = vadd.f32 %v2315, %v2343
        %v2345 = vpop.f32.mrf.mxu0
        %v2346 = vadd.f32 %v2317, %v2345
        %2347 = vdwg.mxu0
        %2348 = vmatpush.bf16.msra.mxu0 %v2085
        %2349 = vmatpush.bf16.msra.mxu0 %v2084
        %2350 = vmatpush.bf16.msra.mxu0 %v2083
        %2351 = vmatpush.bf16.msra.mxu0 %v2082
        %2352 = vmatpush.bf16.msra.mxu0 %v2081
        %2353 = vmatpush.bf16.msra.mxu0 %v2080
        %2354 = vmatpush.bf16.msra.mxu0 %v2079
        %2355 = vmatpush.bf16.msra.mxu0 %v2078
        %2356 = vmatmul.bf16.gmra.mxu0 %v1554
        %v2357 = vpop.f32.mrf.mxu0
        %v2358 = vadd.f32 %v2329, %v2357
        %v2359 = vpop.f32.mrf.mxu0
        %v2360 = vadd.f32 %v2331, %v2359
        %2361 = vmatmul.bf16.gmra.mxu0 %v1555
        %v2362 = vpop.f32.mrf.mxu0
        %v2363 = vadd.f32 %v2334, %v2362
        %v2364 = vpop.f32.mrf.mxu0
        %v2365 = vadd.f32 %v2336, %v2364
        %2366 = vmatmul.bf16.gmra.mxu0 %v1556
        %v2367 = vpop.f32.mrf.mxu0
        %v2368 = vadd.f32 %v2339, %v2367
        %v2369 = vpop.f32.mrf.mxu0
        %v2370 = vadd.f32 %v2341, %v2369
        %2371 = vmatmul.bf16.gmra.mxu0 %v1557
        %v2372 = vpop.f32.mrf.mxu0
        %v2373 = vadd.f32 %v2344, %v2372
        %v2374 = vpop.f32.mrf.mxu0
        %v2375 = vadd.f32 %v2346, %v2374
        %2376 = vdwg.mxu0
        %2377 = vmatpush.bf16.msra.mxu0 %v2093
        %2378 = vmatpush.bf16.msra.mxu0 %v2092
        %2379 = vmatpush.bf16.msra.mxu0 %v2091
        %2380 = vmatpush.bf16.msra.mxu0 %v2090
        %2381 = vmatpush.bf16.msra.mxu0 %v2089
        %2382 = vmatpush.bf16.msra.mxu0 %v2088
        %2383 = vmatpush.bf16.msra.mxu0 %v2087
        %2384 = vmatpush.bf16.msra.mxu0 %v2086
        %2385 = vmatmul.bf16.gmra.mxu0 %v1570
        %v2386 = vpop.f32.mrf.mxu0
        %v2387 = vadd.f32 %v2358, %v2386
        %v2388 = vpop.f32.mrf.mxu0
        %v2389 = vadd.f32 %v2360, %v2388
        %2390 = vmatmul.bf16.gmra.mxu0 %v1571
        %v2391 = vpop.f32.mrf.mxu0
        %v2392 = vadd.f32 %v2363, %v2391
        %v2393 = vpop.f32.mrf.mxu0
        %v2394 = vadd.f32 %v2365, %v2393
        %2395 = vmatmul.bf16.gmra.mxu0 %v1572
        %v2396 = vpop.f32.mrf.mxu0
        %v2397 = vadd.f32 %v2368, %v2396
        %v2398 = vpop.f32.mrf.mxu0
        %v2399 = vadd.f32 %v2370, %v2398
        %2400 = vmatmul.bf16.gmra.mxu0 %v1573
        %v2401 = vpop.f32.mrf.mxu0
        %v2402 = vadd.f32 %v2373, %v2401
        %v2403 = vpop.f32.mrf.mxu0
        %v2404 = vadd.f32 %v2375, %v2403
        %2405 = vdwg.mxu0
        %2406 = vmatpush.bf16.msra.mxu0 %v2101
        %2407 = vmatpush.bf16.msra.mxu0 %v2100
        %2408 = vmatpush.bf16.msra.mxu0 %v2099
        %2409 = vmatpush.bf16.msra.mxu0 %v2098
        %2410 = vmatpush.bf16.msra.mxu0 %v2097
        %2411 = vmatpush.bf16.msra.mxu0 %v2096
        %2412 = vmatpush.bf16.msra.mxu0 %v2095
        %2413 = vmatpush.bf16.msra.mxu0 %v2094
        %2414 = vmatmul.bf16.gmra.mxu0 %v1586
        %v2415 = vpop.f32.mrf.mxu0
        %v2416 = vadd.f32 %v2387, %v2415
        %v2417 = vpop.f32.mrf.mxu0
        %v2418 = vadd.f32 %v2389, %v2417
        %2419 = vmatmul.bf16.gmra.mxu0 %v1587
        %v2420 = vpop.f32.mrf.mxu0
        %v2421 = vadd.f32 %v2392, %v2420
        %v2422 = vpop.f32.mrf.mxu0
        %v2423 = vadd.f32 %v2394, %v2422
        %2424 = vmatmul.bf16.gmra.mxu0 %v1588
        %v2425 = vpop.f32.mrf.mxu0
        %v2426 = vadd.f32 %v2397, %v2425
        %v2427 = vpop.f32.mrf.mxu0
        %v2428 = vadd.f32 %v2399, %v2427
        %2429 = vmatmul.bf16.gmra.mxu0 %v1589
        %v2430 = vpop.f32.mrf.mxu0
        %v2431 = vadd.f32 %v2402, %v2430
        %v2432 = vpop.f32.mrf.mxu0
        %v2433 = vadd.f32 %v2404, %v2432
        %2434 = vdwg.mxu0
        %v2435 = vmax.f32 %v2416, 0.0
        %v2436 = vmax.f32 %v2418, 0.0
        %v2437 = vmax.f32 %v2421, 0.0
        %v2438 = vmax.f32 %v2423, 0.0
        %v2439 = vmax.f32 %v2426, 0.0
        %v2440 = vmax.f32 %v2428, 0.0
        %v2441 = vmax.f32 %v2431, 0.0
        %v2442 = vmax.f32 %v2433, 0.0
        %v2443 = vpack.c.bf16 %v2436, %v2435
        %v2444 = vpack.c.bf16 %v2438, %v2437
        %v2445 = vpack.c.bf16 %v2440, %v2439
        %v2446 = vpack.c.bf16 %v2442, %v2441
        %v2447 = vld [vmem:[%s5] sm:$0xff]
        %v2448 = vld [vmem:[%s5 + $0x8] sm:$0xff]
        %v2449 = vld [vmem:[%s5 + $0x10] sm:$0xff]
        %v2450 = vld [vmem:[%s5 + $0x18] sm:$0xff]
        %v2451 = vld [vmem:[%s5 + $0x20] sm:$0xff]
        %v2452 = vld [vmem:[%s5 + $0x28] sm:$0xff]
        %v2453 = vld [vmem:[%s5 + $0x30] sm:$0xff]
        %v2454 = vld [vmem:[%s5 + $0x38] sm:$0xff]
        %v2455 = vld [vmem:[%s5 + $0x40] sm:$0xff]
        %v2456 = vld [vmem:[%s5 + $0x48] sm:$0xff]
        %v2457 = vld [vmem:[%s5 + $0x50] sm:$0xff]
        %v2458 = vld [vmem:[%s5 + $0x58] sm:$0xff]
        %v2459 = vld [vmem:[%s5 + $0x60] sm:$0xff]
        %v2460 = vld [vmem:[%s5 + $0x68] sm:$0xff]
        %v2461 = vld [vmem:[%s5 + $0x70] sm:$0xff]
        %v2462 = vld [vmem:[%s5 + $0x78] sm:$0xff]
        %v2463 = vld [vmem:[%s6] sm:$0x3]
        %v2465 = vperm.slane %v2463, 0
        %v2466 = vperm.slane %v2463, 1
        %v2485 = vunpack.c.l.b16 %v2447
        %v2486 = vunpack.c.h.b16 %v2447
        %v2487 = vunpack.c.l.b16 %v2448
        %v2488 = vunpack.c.h.b16 %v2448
        %v2489 = vunpack.c.l.b16 %v2449
        %v2490 = vunpack.c.h.b16 %v2449
        %v2491 = vunpack.c.l.b16 %v2450
        %v2492 = vunpack.c.h.b16 %v2450
        %v2493 = vunpack.c.l.b16 %v2451
        %v2494 = vunpack.c.h.b16 %v2451
        %v2495 = vunpack.c.l.b16 %v2452
        %v2496 = vunpack.c.h.b16 %v2452
        %v2497 = vunpack.c.l.b16 %v2453
        %v2498 = vunpack.c.h.b16 %v2453
        %v2499 = vunpack.c.l.b16 %v2454
        %v2500 = vunpack.c.h.b16 %v2454
        %v2501 = vunpack.c.l.b16 %v2455
        %v2502 = vunpack.c.h.b16 %v2455
        %v2503 = vunpack.c.l.b16 %v2456
        %v2504 = vunpack.c.h.b16 %v2456
        %v2505 = vunpack.c.l.b16 %v2457
        %v2506 = vunpack.c.h.b16 %v2457
        %v2507 = vunpack.c.l.b16 %v2458
        %v2508 = vunpack.c.h.b16 %v2458
        %v2509 = vunpack.c.l.b16 %v2459
        %v2510 = vunpack.c.h.b16 %v2459
        %v2511 = vunpack.c.l.b16 %v2460
        %v2512 = vunpack.c.h.b16 %v2460
        %v2513 = vunpack.c.l.b16 %v2461
        %v2514 = vunpack.c.h.b16 %v2461
        %v2515 = vunpack.c.l.b16 %v2462
        %v2516 = vunpack.c.h.b16 %v2462
        %v2517 = vpack.c.b16 %v2487, %v2485
        %v2518 = vpack.c.b16 %v2488, %v2486
        %v2519 = vpack.c.b16 %v2491, %v2489
        %v2520 = vpack.c.b16 %v2492, %v2490
        %v2521 = vpack.c.b16 %v2495, %v2493
        %v2522 = vpack.c.b16 %v2496, %v2494
        %v2523 = vpack.c.b16 %v2499, %v2497
        %v2524 = vpack.c.b16 %v2500, %v2498
        %v2525 = vpack.c.b16 %v2503, %v2501
        %v2526 = vpack.c.b16 %v2504, %v2502
        %v2527 = vpack.c.b16 %v2507, %v2505
        %v2528 = vpack.c.b16 %v2508, %v2506
        %v2529 = vpack.c.b16 %v2511, %v2509
        %v2530 = vpack.c.b16 %v2512, %v2510
        %v2531 = vpack.c.b16 %v2515, %v2513
        %v2532 = vpack.c.b16 %v2516, %v2514
        %2549 = vmatpush.bf16.msra.mxu0 %v2531
        %2550 = vmatpush.bf16.msra.mxu0 %v2529
        %2551 = vmatpush.bf16.msra.mxu0 %v2527
        %2552 = vmatpush.bf16.msra.mxu0 %v2525
        %2553 = vmatpush.bf16.msra.mxu0 %v2523
        %2554 = vmatpush.bf16.msra.mxu0 %v2521
        %2555 = vmatpush.bf16.msra.mxu0 %v2519
        %2556 = vmatpush.bf16.msra.mxu0 %v2517
        %2557 = vmatmul.bf16.gmra.mxu0 %v2443
        %v2558 = vpop.f32.mrf.mxu0
        %v2559 = vadd.f32 %v2465, %v2558
        %v2560 = vpop.f32.mrf.mxu0
        %v2561 = vadd.f32 %v2465, %v2560
        %2562 = vmatmul.bf16.gmra.mxu0 %v2444
        %v2563 = vpop.f32.mrf.mxu0
        %v2564 = vadd.f32 %v2465, %v2563
        %v2565 = vpop.f32.mrf.mxu0
        %v2566 = vadd.f32 %v2465, %v2565
        %2567 = vmatmul.bf16.gmra.mxu0 %v2445
        %v2568 = vpop.f32.mrf.mxu0
        %v2569 = vadd.f32 %v2465, %v2568
        %v2570 = vpop.f32.mrf.mxu0
        %v2571 = vadd.f32 %v2465, %v2570
        %2572 = vmatmul.bf16.gmra.mxu0 %v2446
        %v2573 = vpop.f32.mrf.mxu0
        %v2574 = vadd.f32 %v2465, %v2573
        %v2575 = vpop.f32.mrf.mxu0
        %v2576 = vadd.f32 %v2465, %v2575
        %2577 = vdwg.mxu0
        %2578 = vmatpush.bf16.msra.mxu0 %v2532
        %2579 = vmatpush.bf16.msra.mxu0 %v2530
        %2580 = vmatpush.bf16.msra.mxu0 %v2528
        %2581 = vmatpush.bf16.msra.mxu0 %v2526
        %2582 = vmatpush.bf16.msra.mxu0 %v2524
        %2583 = vmatpush.bf16.msra.mxu0 %v2522
        %2584 = vmatpush.bf16.msra.mxu0 %v2520
        %2585 = vmatpush.bf16.msra.mxu0 %v2518
        %2586 = vmatmul.bf16.gmra.mxu0 %v2443
        %v2587 = vpop.f32.mrf.mxu0
        %v2588 = vadd.f32 %v2466, %v2587
        %v2589 = vpop.f32.mrf.mxu0
        %v2590 = vadd.f32 %v2466, %v2589
        %2591 = vmatmul.bf16.gmra.mxu0 %v2444
        %v2592 = vpop.f32.mrf.mxu0
        %v2593 = vadd.f32 %v2466, %v2592
        %v2594 = vpop.f32.mrf.mxu0
        %v2595 = vadd.f32 %v2466, %v2594
        %2596 = vmatmul.bf16.gmra.mxu0 %v2445
        %v2597 = vpop.f32.mrf.mxu0
        %v2598 = vadd.f32 %v2466, %v2597
        %v2599 = vpop.f32.mrf.mxu0
        %v2600 = vadd.f32 %v2466, %v2599
        %2601 = vmatmul.bf16.gmra.mxu0 %v2446
        %v2602 = vpop.f32.mrf.mxu0
        %v2603 = vadd.f32 %v2466, %v2602
        %v2604 = vpop.f32.mrf.mxu0
        %v2605 = vadd.f32 %v2466, %v2604
        %2606 = vdwg.mxu0
        %v2607 = vadd.f32 %v2559, %v2561
        %v2608 = vadd.f32 %v2607, %v2564
        %v2609 = vadd.f32 %v2608, %v2566
        %v2610 = vadd.f32 %v2609, %v2569
        %v2611 = vadd.f32 %v2610, %v2571
        %v2612 = vadd.f32 %v2611, %v2574
        %v2613 = vadd.f32 %v2612, %v2576
        %v2614 = vrot.slane %v2613, 4
        %v2615 = vadd.f32 %v2613, %v2614
        %v2616 = vrot.slane %v2615, 2
        %v2617 = vadd.f32 %v2615, %v2616
        %v2618 = vrot.slane %v2617, 1
        %v2619 = vadd.f32 %v2617, %v2618
        %v2620 = vadd.f32 %v2588, %v2590
        %v2621 = vadd.f32 %v2620, %v2593
        %v2622 = vadd.f32 %v2621, %v2595
        %v2623 = vadd.f32 %v2622, %v2598
        %v2624 = vadd.f32 %v2623, %v2600
        %v2625 = vadd.f32 %v2624, %v2603
        %v2626 = vadd.f32 %v2625, %v2605
        %v2627 = vrot.slane %v2626, 4
        %v2628 = vadd.f32 %v2626, %v2627
        %v2629 = vrot.slane %v2628, 2
        %v2630 = vadd.f32 %v2628, %v2629
        %v2631 = vrot.slane %v2630, 1
        %v2632 = vadd.f32 %v2630, %v2631
        %v2633 = vrcp.pop 64.0
        %v2634 = vmul.f32 64.0, %v2633
        %v2635 = vsub.f32 1.0, %v2634
        %v2636 = vmul.f32 %v2633, %v2635
        %v2637 = vadd.f32 %v2633, %v2636
        %vm2638 = vweird.f32 %v2633
        %v2639 = vsel %vm2638, %v2633, %v2637
        %v2640 = vmul.f32 %v2619, %v2639
        %v2641 = vmul.f32 %v2632, %v2639
        %v2642 = vld [vmem:[%s7] sm:$0xff]
        %v2643 = vld [vmem:[%s7 + $0x8] sm:$0xff]
        %v2644 = vld [vmem:[%s7 + $0x10] sm:$0xff]
        %v2645 = vld [vmem:[%s7 + $0x18] sm:$0xff]
        %v2646 = vld [vmem:[%s7 + $0x20] sm:$0xff]
        %v2647 = vld [vmem:[%s7 + $0x28] sm:$0xff]
        %v2648 = vld [vmem:[%s7 + $0x30] sm:$0xff]
        %v2649 = vld [vmem:[%s7 + $0x38] sm:$0xff]
        %v2650 = vld [vmem:[%s7 + $0x40] sm:$0xff]
        %v2651 = vld [vmem:[%s7 + $0x48] sm:$0xff]
        %v2652 = vld [vmem:[%s7 + $0x50] sm:$0xff]
        %v2653 = vld [vmem:[%s7 + $0x58] sm:$0xff]
        %v2654 = vld [vmem:[%s7 + $0x60] sm:$0xff]
        %v2655 = vld [vmem:[%s7 + $0x68] sm:$0xff]
        %v2656 = vld [vmem:[%s7 + $0x70] sm:$0xff]
        %v2657 = vld [vmem:[%s7 + $0x78] sm:$0xff]
        %v2658 = vld [vmem:[%s7 + $0x80] sm:$0xff]
        %v2659 = vld [vmem:[%s7 + $0x88] sm:$0xff]
        %v2660 = vld [vmem:[%s7 + $0x90] sm:$0xff]
        %v2661 = vld [vmem:[%s7 + $0x98] sm:$0xff]
        %v2662 = vld [vmem:[%s7 + $0xa0] sm:$0xff]
        %v2663 = vld [vmem:[%s7 + $0xa8] sm:$0xff]
        %v2664 = vld [vmem:[%s7 + $0xb0] sm:$0xff]
        %v2665 = vld [vmem:[%s7 + $0xb8] sm:$0xff]
        %v2666 = vld [vmem:[%s7 + $0xc0] sm:$0xff]
        %v2667 = vld [vmem:[%s7 + $0xc8] sm:$0xff]
        %v2668 = vld [vmem:[%s7 + $0xd0] sm:$0xff]
        %v2669 = vld [vmem:[%s7 + $0xd8] sm:$0xff]
        %v2670 = vld [vmem:[%s7 + $0xe0] sm:$0xff]
        %v2671 = vld [vmem:[%s7 + $0xe8] sm:$0xff]
        %v2672 = vld [vmem:[%s7 + $0xf0] sm:$0xff]
        %v2673 = vld [vmem:[%s7 + $0xf8] sm:$0xff]
        %v2674 = vld [vmem:[%s8] sm:$0x1]
        %2675 = vmatpush.msra.mxu0 %v2657
        %2676 = vmatpush.msra.mxu0 %v2656
        %2677 = vmatpush.msra.mxu0 %v2655
        %2678 = vmatpush.msra.mxu0 %v2654
        %2679 = vmatpush.msra.mxu0 %v2653
        %2680 = vmatpush.msra.mxu0 %v2652
        %2681 = vmatpush.msra.mxu0 %v2651
        %2682 = vmatpush.msra.mxu0 %v2650
        %2683 = vmatpush.msra.mxu0 %v2649
        %2684 = vmatpush.msra.mxu0 %v2648
        %2685 = vmatpush.msra.mxu0 %v2647
        %2686 = vmatpush.msra.mxu0 %v2646
        %2687 = vmatpush.msra.mxu0 %v2645
        %2688 = vmatpush.msra.mxu0 %v2644
        %2689 = vmatpush.msra.mxu0 %v2643
        %2690 = vmatpush.msra.mxu0 %v2642
        %2691 = vmatmul.f32.gmra.mxu0 %v2640
        %v2692 = vpop.f32.mrf.mxu0
        %v2693 = vadd.f32 %v2674, %v2692
        %2694 = vdwg.mxu0
        %2695 = vmatpush.msra.mxu0 %v2673
        %2696 = vmatpush.msra.mxu0 %v2672
        %2697 = vmatpush.msra.mxu0 %v2671
        %2698 = vmatpush.msra.mxu0 %v2670
        %2699 = vmatpush.msra.mxu0 %v2669
        %2700 = vmatpush.msra.mxu0 %v2668
        %2701 = vmatpush.msra.mxu0 %v2667
        %2702 = vmatpush.msra.mxu0 %v2666
        %2703 = vmatpush.msra.mxu0 %v2665
        %2704 = vmatpush.msra.mxu0 %v2664
        %2705 = vmatpush.msra.mxu0 %v2663
        %2706 = vmatpush.msra.mxu0 %v2662
        %2707 = vmatpush.msra.mxu0 %v2661
        %2708 = vmatpush.msra.mxu0 %v2660
        %2709 = vmatpush.msra.mxu0 %v2659
        %2710 = vmatpush.msra.mxu0 %v2658
        %2711 = vmatmul.f32.gmra.mxu0 %v2641
        %v2712 = vpop.f32.mrf.mxu0
        %v2713 = vadd.f32 %v2693, %v2712
        %2714 = vdwg.mxu0
        %v2715 = vmax.f32 %v2713, 0.0
        %v2716 = vld [vmem:[#allocation8] sm:$0xff]
        %v2717 = vld [vmem:[#allocation8 + $0x8] sm:$0xff]
        %v2718 = vld [vmem:[#allocation8 + $0x10] sm:$0xff]
        %v2719 = vld [vmem:[#allocation8 + $0x18] sm:$0xff]
        %v2720 = vld [vmem:[%s10] sm:$0x3]
        %v2722 = vperm.slane %v2720, 0
        %v2723 = vperm.slane %v2720, 1
        %vm2726 = vcmask 130048
        %v2728 = vsel %vm2726, %v2715, 0
        %2730 = vmatpush.msra.mxu0 0.0
        %2731 = vmatpush.msra.mxu0 0.0
        %2732 = vmatpush.msra.mxu0 0.0
        %2733 = vmatpush.msra.mxu0 0.0
        %2734 = vmatpush.msra.mxu0 0.0
        %2735 = vmatpush.msra.mxu0 0.0
        %2736 = vmatpush.msra.mxu0 0.0
        %2737 = vmatpush.msra.mxu0 0.0
        %2738 = vmatpush.msra.mxu0 0.0
        %2739 = vmatpush.msra.mxu0 0.0
        %2740 = vmatpush.msra.mxu0 0.0
        %2741 = vmatpush.msra.mxu0 0.0
        %2742 = vmatpush.msra.mxu0 0.0
        %2743 = vmatpush.msra.mxu0 0.0
        %2744 = vmatpush.msra.mxu0 %v2718
        %2745 = vmatpush.msra.mxu0 %v2716
        %2746 = vmatmul.f32.gmra.mxu0 %v2728
        %v2747 = vpop.f32.mrf.mxu0
        %v2748 = vadd.f32 %v2722, %v2747
        %2749 = vdwg.mxu0
        %2750 = vmatpush.msra.mxu0 0.0
        %2751 = vmatpush.msra.mxu0 0.0
        %2752 = vmatpush.msra.mxu0 0.0
        %2753 = vmatpush.msra.mxu0 0.0
        %2754 = vmatpush.msra.mxu0 0.0
        %2755 = vmatpush.msra.mxu0 0.0
        %2756 = vmatpush.msra.mxu0 0.0
        %2757 = vmatpush.msra.mxu0 0.0
        %2758 = vmatpush.msra.mxu0 0.0
        %2759 = vmatpush.msra.mxu0 0.0
        %2760 = vmatpush.msra.mxu0 0.0
        %2761 = vmatpush.msra.mxu0 0.0
        %2762 = vmatpush.msra.mxu0 0.0
        %2763 = vmatpush.msra.mxu0 0.0
        %2764 = vmatpush.msra.mxu0 %v2719
        %2765 = vmatpush.msra.mxu0 %v2717
        %2766 = vmatmul.f32.gmra.mxu0 %v2728
        %v2767 = vpop.f32.mrf.mxu0
        %v2768 = vadd.f32 %v2723, %v2767
        %2769 = vdwg.mxu0
        %v2770 = vsub.f32 0.0, %v2748
        %v2771 = vsub.f32 0.0, %v2768
        %v2772 = vmul.f32 %v2770, 1.442695
        %v2773 = vpow.pop %v2772
        %v2774 = vmul.f32 %v2771, 1.442695
        %v2775 = vpow.pop %v2774
        %v2776 = vadd.f32 %v2773, 1.0
        %v2777 = vadd.f32 %v2775, 1.0
        %v2778 = vrcp.pop %v2776
        %v2779 = vmul.f32 %v2776, %v2778
        %v2780 = vsub.f32 1.0, %v2779
        %v2781 = vmul.f32 %v2778, %v2780
        %v2782 = vadd.f32 %v2778, %v2781
        %vm2783 = vweird.f32 %v2776
        %vm2784 = vweird.f32 %v2778
        %vm2785 = vmor %vm2783, %vm2784
        %v2786 = vsel %vm2785, %v2778, %v2782
        %v2787 = vand.u32 2147483647, %v2776
        %vm2788 = vcmp.eq.f32.partialorder %v2787, 8.507059e+37
        %v2789 = vand.u32 %v2776, 2147483648
        %v2790 = vor.u32 1.1754944e-38, %v2789
        %v2791 = vsel %vm2788, %v2790, %v2786
        %v2792 = vmul.f32 1.0, %v2791
        %v2793 = vrcp.pop %v2777
        %v2794 = vmul.f32 %v2777, %v2793
        %v2795 = vsub.f32 1.0, %v2794
        %v2796 = vmul.f32 %v2793, %v2795
        %v2797 = vadd.f32 %v2793, %v2796
        %vm2798 = vweird.f32 %v2777
        %vm2799 = vweird.f32 %v2793
        %vm2800 = vmor %vm2798, %vm2799
        %v2801 = vsel %vm2800, %v2793, %v2797
        %v2802 = vand.u32 2147483647, %v2777
        %vm2803 = vcmp.eq.f32.partialorder %v2802, 8.507059e+37
        %v2804 = vand.u32 %v2777, 2147483648
        %v2805 = vor.u32 1.1754944e-38, %v2804
        %v2806 = vsel %vm2803, %v2805, %v2801
        %v2807 = vmul.f32 1.0, %v2806
        %v2808 = vperm.slane %v2792, 0
        %v2809 = vperm.slane %v2807, 0
        %v2810 = vmul.f32 %v2808, %v2559
        %v2811 = vmul.f32 %v2809, %v2588
        %v2812 = vmul.f32 %v2808, %v2561
        %v2813 = vmul.f32 %v2809, %v2590
        %v2814 = vmul.f32 %v2808, %v2564
        %v2815 = vmul.f32 %v2809, %v2593
        %v2816 = vmul.f32 %v2808, %v2566
        %v2817 = vmul.f32 %v2809, %v2595
        %v2818 = vmul.f32 %v2808, %v2569
        %v2819 = vmul.f32 %v2809, %v2598
        %v2820 = vmul.f32 %v2808, %v2571
        %v2821 = vmul.f32 %v2809, %v2600
        %v2822 = vmul.f32 %v2808, %v2574
        %v2823 = vmul.f32 %v2809, %v2603
        %v2824 = vmul.f32 %v2808, %v2576
        %v2825 = vmul.f32 %v2809, %v2605
        %v2826 = vadd.f32 %v2810, %v602
        %v2827 = vadd.f32 %v2811, %v631
        %v2828 = vadd.f32 %v2812, %v604
        %v2829 = vadd.f32 %v2813, %v633
        %v2830 = vadd.f32 %v2814, %v607
        %v2831 = vadd.f32 %v2815, %v636
        %v2832 = vadd.f32 %v2816, %v609
        %v2833 = vadd.f32 %v2817, %v638
        %v2834 = vadd.f32 %v2818, %v612
        %v2835 = vadd.f32 %v2819, %v641
        %v2836 = vadd.f32 %v2820, %v614
        %v2837 = vadd.f32 %v2821, %v643
        %v2838 = vadd.f32 %v2822, %v617
        %v2839 = vadd.f32 %v2823, %v646
        %v2840 = vadd.f32 %v2824, %v619
        %v2841 = vadd.f32 %v2825, %v648
        %v2842 = vmax.f32 %v2826, 0.0
        %v2843 = vmax.f32 %v2827, 0.0
        %v2844 = vmax.f32 %v2828, 0.0
        %v2845 = vmax.f32 %v2829, 0.0
        %v2846 = vmax.f32 %v2830, 0.0
        %v2847 = vmax.f32 %v2831, 0.0
        %v2848 = vmax.f32 %v2832, 0.0
        %v2849 = vmax.f32 %v2833, 0.0
        %v2850 = vmax.f32 %v2834, 0.0
        %v2851 = vmax.f32 %v2835, 0.0
        %v2852 = vmax.f32 %v2836, 0.0
        %v2853 = vmax.f32 %v2837, 0.0
        %v2854 = vmax.f32 %v2838, 0.0
        %v2855 = vmax.f32 %v2839, 0.0
        %v2856 = vmax.f32 %v2840, 0.0
        %v2857 = vmax.f32 %v2841, 0.0
        %2858 = vst [vmem:[%s427] sm:$0xff] %v2842
        %2859 = vst [vmem:[%s427 + $0x8] sm:$0xff] %v2843
        %2860 = vst [vmem:[%s427 + $0x10] sm:$0xff] %v2844
        %2861 = vst [vmem:[%s427 + $0x18] sm:$0xff] %v2845
        %2862 = vst [vmem:[%s427 + $0x20] sm:$0xff] %v2846
        %2863 = vst [vmem:[%s427 + $0x28] sm:$0xff] %v2847
        %2864 = vst [vmem:[%s427 + $0x30] sm:$0xff] %v2848
        %2865 = vst [vmem:[%s427 + $0x38] sm:$0xff] %v2849
        %2866 = vst [vmem:[%s427 + $0x40] sm:$0xff] %v2850
        %2867 = vst [vmem:[%s427 + $0x48] sm:$0xff] %v2851
        %2868 = vst [vmem:[%s427 + $0x50] sm:$0xff] %v2852
        %2869 = vst [vmem:[%s427 + $0x58] sm:$0xff] %v2853
        %2870 = vst [vmem:[%s427 + $0x60] sm:$0xff] %v2854
        %2871 = vst [vmem:[%s427 + $0x68] sm:$0xff] %v2855
        %2872 = vst [vmem:[%s427 + $0x70] sm:$0xff] %v2856
        %2873 = vst [vmem:[%s427 + $0x78] sm:$0xff] %v2857
        %s2874 = sand.u32 %s271, 1
        %s2875 = scalar_lea.sflag [#allocation5], %s2874
        %s2876 = sand.u32 %s271, 1
        %s2877 = smul.addr %s2876, 128
        %s2878 = scalar_lea.vmem [#allocation9], %s2877
        // Predicated region
        $region77: #{tpu_custom_call.1} parent=63 // pred_check
          %p2879 = pneg %p281
        $region78: #{tpu_custom_call.1} parent=63 // pred_check_branch
          %2881 = sbr.rel (%p2879) target = $region80
        $region79: #{tpu_custom_call.1} parent=63 // pred_region
          %2883 = vsyncadd %s2875, 0
          %s2884 = smul.addr %s27, 16
          %s2885 = smul.addr %s2884, 8
          %s2886 = scalar_lea.hbm %s11, %s2885
          %s2887 = sshll.u32 %s2878, 4
          %s2888 = int_to_ptr.vmem [resolvable:$true] %s2887
          %s2889 = sshll.u32 %s2886, 4
          %s2890 = int_to_ptr.hbm [resolvable:$true] %s2889
          %2895 = dma.vmem_to_hbm [thread:$0]  %s2888, 2048, %s2890, %s2875, 256, 256, 16
        $region80: #{tpu_custom_call.1} parent=63 // pred_fallthru
          _
      $region64: #{tpu_custom_call.1} parent=5 // pred_fallthru
        _
      %p2896 = scmp.le.s32.totalorder 2, %s22
      // Predicated region
      $region81: #{tpu_custom_call.1} parent=5 // pred_check
        %p2897 = pneg %p2896
      $region82: #{tpu_custom_call.1} parent=5 // pred_check_branch
        %2899 = sbr.rel (%p2897) target = $region84
      $region83: #{tpu_custom_call.1} parent=5 // pred_region
        %s2900 = ssub.s32 %s22, 2
        // Predicated region
        $region85: #{tpu_custom_call.1} parent=83 // pred_check
          %p2901 = pneg %p287
        $region86: #{tpu_custom_call.1} parent=83 // pred_check_branch
          %2903 = sbr.rel (%p2901) target = $region88
        $region87: #{tpu_custom_call.1} parent=83 // pred_region
          %s2904 = sand.u32 %s272, 1
          %s2905 = scalar_lea.sflag [#allocation5], %s2904
          %s2906 = sand.u32 %s272, 1
          %s2907 = smul.addr %s2906, 128
          %s2908 = scalar_lea.vmem [#allocation9], %s2907
          %2910 = dma.done %s2905, 2048
        $region88: #{tpu_custom_call.1} parent=83 // pred_fallthru
          _
      $region84: #{tpu_custom_call.1} parent=5 // pred_fallthru
        _
    $region6: #{tpu_custom_call.1} parent=1 // loop_footer
      %s26 = sadd.s32 1, %s22
    $region7: #{tpu_custom_call.1} parent=1 // loop_footer_branch
      %21 = sbr.rel target = $region3
    $region8: #{tpu_custom_call.1} parent=1 // loop_exit
      _
    %2911 = vsyncpa [#allocation4], 1
    %s2912 = scalar_lea.sflag [#allocation4], 1
    %2913 = vsyncpa %s2912, 1
    %2914 = vsyncpa [#allocation7], 1
    %2915 = vsyncpa [#allocation5], 1
    %s2916 = scalar_lea.sflag [#allocation5], 1
    %2917 = vsyncpa %s2916, 1

</llo_original>
